<compile_context>
chip_gen: v5e
topology: v5e:2x2
jax: 0.10.0
libtpu: 0.0.40
codegen_flags: <defaults>
</compile_context>

<pallas_src>
import functools
import math

import jax
import jax.numpy as jnp
from jax.experimental import pallas as pl
from jax.experimental.pallas import tpu as pltpu


def _layernorm(x, gamma, beta, eps=1e-5):
    mu = jnp.mean(x, axis=-1, keepdims=True)
    var = jnp.mean((x - mu) ** 2, axis=-1, keepdims=True)
    return (x - mu) * jax.lax.rsqrt(var + eps) * gamma + beta


def encoder_kernel(heads, head_dim, seq,
                   q_ref, k_ref, v_ref, m_ref,
                   wq_ref, wk_ref, wv_ref, woT_ref, bo_ref,
                   g1_ref, be1_ref,
                   w1T_ref, bf1_ref, w2T_ref, bf2_ref,
                   g2_ref, be2_ref,
                   out_ref,
                   attn_ref, qp_ref, kp_ref, vp_ref):
    f32 = jnp.float32
    bf16 = jnp.bfloat16
    BS, E = q_ref.shape          # (block_b * S, E)
    B = BS // seq
    D = head_dim

    q = q_ref[...]               # f32, kept full precision for residual / LayerNorm

    # --- full-width Q/K/V projections on the MXU (block-diag per-head weights, bf16) ---
    # K/V arrive as bf16; the bf16 projection results live in VMEM scratch so the head
    # loop reads cheap per-head Ref windows instead of lane-slicing live vregs.
    qp_ref[...] = jnp.dot(q.astype(bf16), wq_ref[...],
                          preferred_element_type=f32).astype(bf16)   # scale folded in
    kp_ref[...] = jnp.dot(k_ref[...], wk_ref[...],
                          preferred_element_type=f32).astype(bf16)
    vp_ref[...] = jnp.dot(v_ref[...], wv_ref[...],
                          preferred_element_type=f32).astype(bf16)

    # Additive mask bias computed ONCE per block (hoisted out of the head loop).
    bias = jnp.where(m_ref[...] == 0, f32(-1e20), f32(0.0))          # (B, S, S)

    # --- multi-head attention, batched over the batch block ---
    # TODO(synk): for long S, tile the key dim (flash-style online softmax) instead of
    # materializing the full (B, S, S) score matrix per head.
    for h in range(heads):
        sl = slice(h * D, (h + 1) * D)
        qh = qp_ref[:, sl].reshape(B, seq, D)
        kh = kp_ref[:, sl].reshape(B, seq, D)
        vh = vp_ref[:, sl].reshape(B, seq, D)
        e = jnp.einsum("bqd,bkd->bqk", qh, kh, preferred_element_type=f32) + bias
        m = jnp.max(e, axis=-1, keepdims=True)
        p = jnp.exp(e - m)
        p = p * pl.reciprocal(jnp.sum(p, axis=-1, keepdims=True), approx=True)
        oh = jnp.einsum("bqk,bkd->bqd", p.astype(bf16), vh,
                        preferred_element_type=f32)                   # (B, S, D)
        attn_ref[:, sl] = oh.reshape(BS, D).astype(bf16)              # bf16 slab store

    # --- output projection + residual + LayerNorm 1 (dropout = identity in eval mode) ---
    ao = jnp.dot(attn_ref[...], woT_ref[...],
                 preferred_element_type=f32) + bo_ref[...]
    x = _layernorm(ao + q, g1_ref[...], be1_ref[...])                 # f32 LayerNorm

    # --- feed forward: Linear -> ReLU -> Linear (bf16 operands, f32 accumulate) ---
    h1 = jnp.dot(x.astype(bf16), w1T_ref[...], preferred_element_type=f32) + bf1_ref[...]
    h1 = jnp.maximum(h1, 0.0)
    ff = jnp.dot(h1.astype(bf16), w2T_ref[...], preferred_element_type=f32) + bf2_ref[...]

    # --- residual + LayerNorm 2 ---
    out_ref[...] = _layernorm(ff + x, g2_ref[...], be2_ref[...]).astype(out_ref.dtype)


def _vmem_capacity_bytes():
    """Generation-aware VMEM capacity (128 MiB on v5e/v6e, 64 MiB per-TC on v7x)."""
    try:
        cap = getattr(pltpu.get_tpu_info(), "vmem_capacity_bytes", None)
        if cap:
            return int(cap)
    except Exception:
        pass
    return 64 * 1024 * 1024     # conservative fallback (v7x per-TC VMEM)


def _pick_block_b(n, s, e, hff, weight_bytes, budget_bytes):
    """Largest batch-block whose modeled VMEM footprint fits the budget.

    Models: double-buffered activation/mask/output blocks, single-buffered bf16 weights,
    the four bf16 (bs,E) scratch slabs, f32 projection outputs, per-head (b,S,S) f32
    score/prob tiles, and the (bs,Hff) FFN intermediate.
    """
    f32b, bf16b = 4, 2

    def block_bytes(b):
        bs = b * s
        io = 2 * (bs * e * f32b            # q block (f32)
                  + 2 * bs * e * bf16b     # k, v blocks (bf16)
                  + b * s * s * bf16b      # mask block (bf16)
                  + bs * e * f32b)         # output block (f32)
        scratch = 4 * bs * e * bf16b       # attn + qp/kp/vp bf16 slabs
        transient = (3 * bs * e * f32b     # f32 projection results before bf16 cast
                     + 3 * b * s * s * f32b  # mask bias + ~2 live per-head score tiles
                     + bs * hff * f32b     # FFN intermediate h1
                     + 2 * bs * e * f32b)  # x / ff f32 temporaries
        return io + scratch + transient

    candidates = [b for b in range(1, n + 1)
                  if n % b == 0 and ((b * s) % 8 == 0 or b == n)]
    if not candidates:
        return n
    # Keep at least 2 grid iterations whenever possible (v7x has 2 TensorCores per chip).
    small = [b for b in candidates if b <= max(1, n // 2)] or candidates
    best = small[0]
    for b in small:
        if weight_bytes + block_bytes(b) <= budget_bytes:
            best = max(best, b)
    return best


def encoder_forward(value, key, query, mask, params, heads):
    N, S, E = query.shape
    if E % heads != 0:
        raise ValueError("embed_size must be divisible by heads")
    D = E // heads
    Hff = params["w1"].shape[0]
    scale = 1.0 / math.sqrt(E)
    f32, bf16 = jnp.float32, jnp.bfloat16

    # Block-diagonal full-width projection weights (per-head (D,D) weights are shared
    # across heads). Softmax scale folded into Wq. bf16 halves weight DMA bytes.
    eye = jnp.eye(heads, dtype=f32)
    wq_full = jnp.kron(eye, params["wq"].T * scale).astype(bf16)   # (E, E)
    wk_full = jnp.kron(eye, params["wk"].T).astype(bf16)
    wv_full = jnp.kron(eye, params["wv"].T).astype(bf16)
    woT = params["wo"].T.astype(bf16)
    w1T = params["w1"].T.astype(bf16)                               # (E, Hff)
    w2T = params["w2"].T.astype(bf16)                               # (Hff, E)

    weights = [wq_full, wk_full, wv_full, woT, params["bo"],
               params["g1"], params["be1"],
               w1T, params["bf1"], w2T, params["bf2"],
               params["g2"], params["be2"]]
    weight_bytes = sum(int(w.size) * w.dtype.itemsize for w in weights)

    cap_bytes = _vmem_capacity_bytes()
    budget_bytes = int(cap_bytes * 0.72)    # ~92 MiB on 128 MiB parts, ~46 MiB on v7x
    block_b = _pick_block_b(N, S, E, Hff, weight_bytes, budget_bytes)
    bs = block_b * S

    data_spec_f32 = pl.BlockSpec((bs, E), lambda b: (b, 0))
    mask_spec = pl.BlockSpec((block_b, S, S), lambda b: (b, 0, 0))

    def pspec(arr):
        # Constant-index weight blocks: single-buffered (double-buffering buys nothing
        # and would double resident weight VMEM).
        nd = arr.ndim
        return pl.BlockSpec(arr.shape, lambda b, _nd=nd: (0,) * _nd,
                            pipeline_mode=pl.Buffered(1))

    in_specs = ([data_spec_f32, data_spec_f32, data_spec_f32, mask_spec]
                + [pspec(w) for w in weights])

    kernel = functools.partial(encoder_kernel, heads, D, S)

    # Q stays f32 (residual / LayerNorm path); K/V are consumed only as bf16 MXU operands
    # and the mask is only compared to 0, so ship them narrow (halves those HBM streams).
    q2 = query.reshape(N * S, E)
    k2 = key.reshape(N * S, E).astype(bf16)
    v2 = value.reshape(N * S, E).astype(bf16)
    mask_n = mask.astype(bf16)

    flops = (2 * N * S * E * (3 * E + E + 2 * Hff)    # QKV (block-diag), Wo, FFN
             + 4 * N * heads * S * S * D)             # QK^T and PV
    transcendentals = N * heads * S * S               # softmax exp
    bytes_accessed = (N * S * E * 4                   # q (f32)
                      + 2 * N * S * E * 2             # k, v (bf16)
                      + N * S * S * 2                 # mask (bf16)
                      + weight_bytes
                      + N * S * E * 4)                # output (f32)

    out = pl.pallas_call(
        kernel,
        out_shape=jax.ShapeDtypeStruct((N * S, E), f32),
        grid_spec=pltpu.PrefetchScalarGridSpec(
            num_scalar_prefetch=0,
            grid=(N // block_b,),
            in_specs=in_specs,
            out_specs=pl.BlockSpec((bs, E), lambda b: (b, 0)),
            scratch_shapes=[pltpu.VMEM((bs, E), bf16),   # attn head-output slab
                            pltpu.VMEM((bs, E), bf16),   # projected Q
                            pltpu.VMEM((bs, E), bf16),   # projected K
                            pltpu.VMEM((bs, E), bf16)],  # projected V
        ),
        compiler_params=pltpu.CompilerParams(
            dimension_semantics=("parallel",),   # independent batch blocks (megacore)
            vmem_limit_bytes=budget_bytes,
        ),
        cost_estimate=pl.CostEstimate(flops=flops,
                                      transcendentals=transcendentals,
                                      bytes_accessed=bytes_accessed),
    )(q2, k2, v2, mask_n, *weights)
    return out.reshape(N, S, E)


def encoder_reference(value, key, query, mask, params, heads):
    """Pure-JAX f32 reference mirroring the PyTorch forward (eval mode)."""
    N, S, E = query.shape
    D = E // heads

    def split(x):
        return x.reshape(N, S, heads, D)

    v = split(value) @ params["wv"].T
    k = split(key) @ params["wk"].T
    q = split(query) @ params["wq"].T
    energy = jnp.einsum("nqhd,nkhd->nhqk", q, k)
    energy = jnp.where(mask[:, None, :, :] == 0, -1e20, energy)
    attn = jax.nn.softmax(energy / (E ** 0.5), axis=-1)
    out = jnp.einsum("nhqk,nkhd->nqhd", attn, v).reshape(N, S, E)
    out = out @ params["wo"].T + params["bo"][0]

    x = out + query
    x = _layernorm(x, params["g1"][0], params["be1"][0])
    h1 = jax.nn.relu(x @ params["w1"].T + params["bf1"][0])
    ff = h1 @ params["w2"].T + params["bf2"][0]
    x2 = ff + x
    return _layernorm(x2, params["g2"][0], params["be2"][0])


def init_params(key, embed_size, heads, forward_expansion):
    D = embed_size // heads
    Hff = forward_expansion * embed_size
    ks = jax.random.split(key, 8)
    scale = 0.1
    return {
        # SelfAttention: per-head projections (no bias) + output projection.
        "wv": scale * jax.random.normal(ks[0], (D, D), jnp.float32),
        "wk": scale * jax.random.normal(ks[1], (D, D), jnp.float32),
        "wq": scale * jax.random.normal(ks[2], (D, D), jnp.float32),
        "wo": scale * jax.random.normal(ks[3], (embed_size, embed_size), jnp.float32),
        "bo": scale * jax.random.normal(ks[4], (1, embed_size), jnp.float32),
        # LayerNorm 1 / 2 (PyTorch defaults: weight=1, bias=0).
        "g1": jnp.ones((1, embed_size), jnp.float32),
        "be1": jnp.zeros((1, embed_size), jnp.float32),
        "g2": jnp.ones((1, embed_size), jnp.float32),
        "be2": jnp.zeros((1, embed_size), jnp.float32),
        # Feed forward.
        "w1": scale * jax.random.normal(ks[5], (Hff, embed_size), jnp.float32),
        "bf1": scale * jax.random.normal(ks[6], (1, Hff), jnp.float32),
        "w2": scale * jax.random.normal(ks[7], (embed_size, Hff), jnp.float32),
        "bf2": jnp.zeros((1, embed_size), jnp.float32),
    }


if __name__ == "__main__":
    N, S, E, heads, fwd_exp = 2, 8, 32, 4, 4

    key = jax.random.PRNGKey(0)
    k_data, k_params = jax.random.split(key)
    kv, kk, kq = jax.random.split(k_data, 3)
    value = jax.random.normal(kv, (N, S, E), jnp.float32)
    key_in = jax.random.normal(kk, (N, S, E), jnp.float32)
    query = jax.random.normal(kq, (N, S, E), jnp.float32)
    # causal mask (0 => masked), broadcast over batch
    mask = jnp.broadcast_to(jnp.tril(jnp.ones((S, S), jnp.float32)), (N, S, S))

    params = init_params(k_params, E, heads, fwd_exp)

    out = encoder_forward(value, key_in, query, mask, params, heads)
    out = jax.block_until_ready(out)

    ref = encoder_reference(value, key_in, query, mask, params, heads)
    # Note: bf16 MXU operands + approx-reciprocal softmax => ~1e-2 level deviation vs f32.
    if not jnp.allclose(out, ref, atol=2e-2, rtol=2e-2):
        raise AssertionError("Pallas kernel output mismatch vs JAX reference")

    print("KERNEL_OK")
</pallas_src>

<mosaic_0001>
module attributes {stable_mosaic.version = 11 : i64} {
  func.func @encoder_kernel(%arg0: i32, %arg1: memref<8x32xf32, #tpu.memory_space<vmem>>, %arg2: memref<8x32xbf16, #tpu.memory_space<vmem>>, %arg3: memref<8x32xbf16, #tpu.memory_space<vmem>>, %arg4: memref<1x8x8xbf16, #tpu.memory_space<vmem>>, %arg5: memref<32x32xbf16, #tpu.memory_space<vmem>>, %arg6: memref<32x32xbf16, #tpu.memory_space<vmem>>, %arg7: memref<32x32xbf16, #tpu.memory_space<vmem>>, %arg8: memref<32x32xbf16, #tpu.memory_space<vmem>>, %arg9: memref<1x32xf32, #tpu.memory_space<vmem>>, %arg10: memref<1x32xf32, #tpu.memory_space<vmem>>, %arg11: memref<1x32xf32, #tpu.memory_space<vmem>>, %arg12: memref<32x128xbf16, #tpu.memory_space<vmem>>, %arg13: memref<1x128xf32, #tpu.memory_space<vmem>>, %arg14: memref<128x32xbf16, #tpu.memory_space<vmem>>, %arg15: memref<1x32xf32, #tpu.memory_space<vmem>>, %arg16: memref<1x32xf32, #tpu.memory_space<vmem>>, %arg17: memref<1x32xf32, #tpu.memory_space<vmem>>, %arg18: memref<8x32xf32, #tpu.memory_space<vmem>>, %arg19: memref<8x32xbf16, #tpu.memory_space<vmem>>, %arg20: memref<8x32xbf16, #tpu.memory_space<vmem>>, %arg21: memref<8x32xbf16, #tpu.memory_space<vmem>>, %arg22: memref<8x32xbf16, #tpu.memory_space<vmem>>) attributes {dimension_semantics = [#tpu.dimension_semantics<parallel>], iteration_bounds = array<i64: 2>, scalar_prefetch = 0 : i64, scratch_operands = 4 : i64, tpu.core_type = #tpu.core_type<tc>, window_params = [{transform_indices = @transform_0, window_bounds = array<i64: 8, 32>}, {transform_indices = @transform_1, window_bounds = array<i64: 8, 32>}, {transform_indices = @transform_2, window_bounds = array<i64: 8, 32>}, {transform_indices = @transform_3, window_bounds = array<i64: 1, 8, 8>}, {pipeline_mode = #tpu.pipeline_mode<synchronous>, transform_indices = @transform_4, window_bounds = array<i64: 32, 32>}, {pipeline_mode = #tpu.pipeline_mode<synchronous>, transform_indices = @transform_5, window_bounds = array<i64: 32, 32>}, {pipeline_mode = #tpu.pipeline_mode<synchronous>, transform_indices = @transform_6, window_bounds = array<i64: 32, 32>}, {pipeline_mode = #tpu.pipeline_mode<synchronous>, transform_indices = @transform_7, window_bounds = array<i64: 32, 32>}, {pipeline_mode = #tpu.pipeline_mode<synchronous>, transform_indices = @transform_8, window_bounds = array<i64: 1, 32>}, {pipeline_mode = #tpu.pipeline_mode<synchronous>, transform_indices = @transform_9, window_bounds = array<i64: 1, 32>}, {pipeline_mode = #tpu.pipeline_mode<synchronous>, transform_indices = @transform_10, window_bounds = array<i64: 1, 32>}, {pipeline_mode = #tpu.pipeline_mode<synchronous>, transform_indices = @transform_11, window_bounds = array<i64: 32, 128>}, {pipeline_mode = #tpu.pipeline_mode<synchronous>, transform_indices = @transform_12, window_bounds = array<i64: 1, 128>}, {pipeline_mode = #tpu.pipeline_mode<synchronous>, transform_indices = @transform_13, window_bounds = array<i64: 128, 32>}, {pipeline_mode = #tpu.pipeline_mode<synchronous>, transform_indices = @transform_14, window_bounds = array<i64: 1, 32>}, {pipeline_mode = #tpu.pipeline_mode<synchronous>, transform_indices = @transform_15, window_bounds = array<i64: 1, 32>}, {pipeline_mode = #tpu.pipeline_mode<synchronous>, transform_indices = @transform_16, window_bounds = array<i64: 1, 32>}, {transform_indices = @transform_17, window_bounds = array<i64: 8, 32>}]} {
    %c0 = arith.constant 0 : index
    %c0_0 = arith.constant 0 : index
    %0 = vector.load %arg1[%c0, %c0_0] : memref<8x32xf32, #tpu.memory_space<vmem>>, vector<8x32xf32>
    %1 = arith.truncf %0 : vector<8x32xf32> to vector<8x32xbf16>
    %c0_1 = arith.constant 0 : index
    %c0_2 = arith.constant 0 : index
    %2 = vector.load %arg5[%c0_1, %c0_2] : memref<32x32xbf16, #tpu.memory_space<vmem>>, vector<32x32xbf16>
    %cst = arith.constant dense<0.000000e+00> : vector<8x32xf32>
    %3 = tpu.matmul %1, %2, %cst {dimension_numbers = #tpu.dot_dimension_numbers<[1], [0], [0], [1], [0, 0, 1, 1], [], []>} : vector<8x32xbf16>, vector<32x32xbf16>, vector<8x32xf32> -> vector<8x32xf32>
    %4 = arith.truncf %3 : vector<8x32xf32> to vector<8x32xbf16>
    %c0_3 = arith.constant 0 : index
    %c0_4 = arith.constant 0 : index
    %5 = vector.load %arg20[%c0_3, %c0_4] : memref<8x32xbf16, #tpu.memory_space<vmem>>, vector<8x32xbf16>
    tpu.vector_store %arg20[%c0_3, %c0_4], %4 {strides = array<i32>} : memref<8x32xbf16, #tpu.memory_space<vmem>>, vector<8x32xbf16>,
    %c0_5 = arith.constant 0 : index
    %c0_6 = arith.constant 0 : index
    %6 = vector.load %arg2[%c0_5, %c0_6] : memref<8x32xbf16, #tpu.memory_space<vmem>>, vector<8x32xbf16>
    %c0_7 = arith.constant 0 : index
    %c0_8 = arith.constant 0 : index
    %7 = vector.load %arg6[%c0_7, %c0_8] : memref<32x32xbf16, #tpu.memory_space<vmem>>, vector<32x32xbf16>
    %cst_9 = arith.constant dense<0.000000e+00> : vector<8x32xf32>
    %8 = tpu.matmul %6, %7, %cst_9 {dimension_numbers = #tpu.dot_dimension_numbers<[1], [0], [0], [1], [0, 0, 1, 1], [], []>} : vector<8x32xbf16>, vector<32x32xbf16>, vector<8x32xf32> -> vector<8x32xf32>
    %9 = arith.truncf %8 : vector<8x32xf32> to vector<8x32xbf16>
    %c0_10 = arith.constant 0 : index
    %c0_11 = arith.constant 0 : index
    %10 = vector.load %arg21[%c0_10, %c0_11] : memref<8x32xbf16, #tpu.memory_space<vmem>>, vector<8x32xbf16>
    tpu.vector_store %arg21[%c0_10, %c0_11], %9 {strides = array<i32>} : memref<8x32xbf16, #tpu.memory_space<vmem>>, vector<8x32xbf16>,
    %c0_12 = arith.constant 0 : index
    %c0_13 = arith.constant 0 : index
    %11 = vector.load %arg3[%c0_12, %c0_13] : memref<8x32xbf16, #tpu.memory_space<vmem>>, vector<8x32xbf16>
    %c0_14 = arith.constant 0 : index
    %c0_15 = arith.constant 0 : index
    %12 = vector.load %arg7[%c0_14, %c0_15] : memref<32x32xbf16, #tpu.memory_space<vmem>>, vector<32x32xbf16>
    %cst_16 = arith.constant dense<0.000000e+00> : vector<8x32xf32>
    %13 = tpu.matmul %11, %12, %cst_16 {dimension_numbers = #tpu.dot_dimension_numbers<[1], [0], [0], [1], [0, 0, 1, 1], [], []>} : vector<8x32xbf16>, vector<32x32xbf16>, vector<8x32xf32> -> vector<8x32xf32>
    %14 = arith.truncf %13 : vector<8x32xf32> to vector<8x32xbf16>
    %c0_17 = arith.constant 0 : index
    %c0_18 = arith.constant 0 : index
    %15 = vector.load %arg22[%c0_17, %c0_18] : memref<8x32xbf16, #tpu.memory_space<vmem>>, vector<8x32xbf16>
    tpu.vector_store %arg22[%c0_17, %c0_18], %14 {strides = array<i32>} : memref<8x32xbf16, #tpu.memory_space<vmem>>, vector<8x32xbf16>,
    %c0_19 = arith.constant 0 : index
    %c0_20 = arith.constant 0 : index
    %c0_21 = arith.constant 0 : index
    %16 = vector.load %arg4[%c0_19, %c0_20, %c0_21] : memref<1x8x8xbf16, #tpu.memory_space<vmem>>, vector<1x8x8xbf16>
    %cst_22 = arith.constant 0.000000e+00 : bf16
    %17 = vector.broadcast %cst_22 : bf16 to vector<1x8x8xbf16>
    %18 = arith.cmpf oeq, %16, %17 : vector<1x8x8xbf16>
    %cst_23 = arith.constant -1.000000e+20 : f32
    %cst_24 = arith.constant 0.000000e+00 : f32
    %19 = vector.broadcast %cst_23 : f32 to vector<1x8x8xf32>
    %20 = vector.broadcast %cst_24 : f32 to vector<1x8x8xf32>
    %21 = arith.select %18, %19, %20 : vector<1x8x8xi1>, vector<1x8x8xf32>
    %c0_25 = arith.constant 0 : index
    %c0_26 = arith.constant 0 : index
    %22 = vector.load %arg20[%c0_25, %c0_26] : memref<8x32xbf16, #tpu.memory_space<vmem>>, vector<8x8xbf16>
    %23 = vector.shape_cast %22 : vector<8x8xbf16> to vector<1x8x8xbf16>
    %c0_27 = arith.constant 0 : index
    %c0_28 = arith.constant 0 : index
    %24 = vector.load %arg21[%c0_27, %c0_28] : memref<8x32xbf16, #tpu.memory_space<vmem>>, vector<8x8xbf16>
    %25 = vector.shape_cast %24 : vector<8x8xbf16> to vector<1x8x8xbf16>
    %c0_29 = arith.constant 0 : index
    %c0_30 = arith.constant 0 : index
    %26 = vector.load %arg22[%c0_29, %c0_30] : memref<8x32xbf16, #tpu.memory_space<vmem>>, vector<8x8xbf16>
    %27 = vector.shape_cast %26 : vector<8x8xbf16> to vector<1x8x8xbf16>
    "tpu.trace_start"() <{level = 10 : i32, message = "bqd,bkd->bqk"}> : () -> ()
    %cst_31 = arith.constant dense<0.000000e+00> : vector<1x8x8xf32>
    %28 = tpu.matmul %23, %25, %cst_31 {dimension_numbers = #tpu.dot_dimension_numbers<[2], [2], [1], [1], [0, 0, 0, 1, 1, 1], [0], [0]>} : vector<1x8x8xbf16>, vector<1x8x8xbf16>, vector<1x8x8xf32> -> vector<1x8x8xf32>
    "tpu.trace_stop"() : () -> ()
    %29 = arith.addf %28, %21 : vector<1x8x8xf32>
    %cst_32 = arith.constant dense<0xFF800000> : vector<1x8xf32>
    %30 = vector.multi_reduction <maximumf>, %29, %cst_32 [2] : vector<1x8x8xf32> to vector<1x8xf32>
    %31 = vector.shape_cast %30 : vector<1x8xf32> to vector<1x8x1xf32>
    %32 = vector.broadcast %31 : vector<1x8x1xf32> to vector<1x8x8xf32>
    %33 = arith.subf %29, %32 : vector<1x8x8xf32>
    %34 = math.exp %33 : vector<1x8x8xf32>
    %cst_33 = arith.constant dense<0.000000e+00> : vector<1x8xf32>
    %35 = vector.multi_reduction <add>, %34, %cst_33 [2] : vector<1x8x8xf32> to vector<1x8xf32>
    %36 = vector.shape_cast %35 : vector<1x8xf32> to vector<1x8x1xf32>
    %37 = tpu.reciprocal %36 {approx = true} : vector<1x8x1xf32> -> vector<1x8x1xf32>
    %38 = vector.broadcast %37 : vector<1x8x1xf32> to vector<1x8x8xf32>
    %39 = arith.mulf %34, %38 : vector<1x8x8xf32>
    %40 = arith.truncf %39 : vector<1x8x8xf32> to vector<1x8x8xbf16>
    "tpu.trace_start"() <{level = 10 : i32, message = "bqk,bkd->bqd"}> : () -> ()
    %cst_34 = arith.constant dense<0.000000e+00> : vector<1x8x8xf32>
    %41 = tpu.matmul %40, %27, %cst_34 {dimension_numbers = #tpu.dot_dimension_numbers<[2], [1], [1], [2], [0, 0, 0, 1, 1, 2], [0], [0]>} : vector<1x8x8xbf16>, vector<1x8x8xbf16>, vector<1x8x8xf32> -> vector<1x8x8xf32>
    "tpu.trace_stop"() : () -> ()
    %42 = vector.shape_cast %41 : vector<1x8x8xf32> to vector<8x8xf32>
    %43 = arith.truncf %42 : vector<8x8xf32> to vector<8x8xbf16>
    %c0_35 = arith.constant 0 : index
    %c0_36 = arith.constant 0 : index
    %44 = vector.load %arg19[%c0_35, %c0_36] : memref<8x32xbf16, #tpu.memory_space<vmem>>, vector<8x8xbf16>
    tpu.vector_store %arg19[%c0_35, %c0_36], %43 {strides = array<i32>} : memref<8x32xbf16, #tpu.memory_space<vmem>>, vector<8x8xbf16>,
    %c0_37 = arith.constant 0 : index
    %c8 = arith.constant 8 : index
    %45 = vector.load %arg20[%c0_37, %c8] : memref<8x32xbf16, #tpu.memory_space<vmem>>, vector<8x8xbf16>
    %46 = vector.shape_cast %45 : vector<8x8xbf16> to vector<1x8x8xbf16>
    %c0_38 = arith.constant 0 : index
    %c8_39 = arith.constant 8 : index
    %47 = vector.load %arg21[%c0_38, %c8_39] : memref<8x32xbf16, #tpu.memory_space<vmem>>, vector<8x8xbf16>
    %48 = vector.shape_cast %47 : vector<8x8xbf16> to vector<1x8x8xbf16>
    %c0_40 = arith.constant 0 : index
    %c8_41 = arith.constant 8 : index
    %49 = vector.load %arg22[%c0_40, %c8_41] : memref<8x32xbf16, #tpu.memory_space<vmem>>, vector<8x8xbf16>
    %50 = vector.shape_cast %49 : vector<8x8xbf16> to vector<1x8x8xbf16>
    "tpu.trace_start"() <{level = 10 : i32, message = "bqd,bkd->bqk"}> : () -> ()
    %cst_42 = arith.constant dense<0.000000e+00> : vector<1x8x8xf32>
    %51 = tpu.matmul %46, %48, %cst_42 {dimension_numbers = #tpu.dot_dimension_numbers<[2], [2], [1], [1], [0, 0, 0, 1, 1, 1], [0], [0]>} : vector<1x8x8xbf16>, vector<1x8x8xbf16>, vector<1x8x8xf32> -> vector<1x8x8xf32>
    "tpu.trace_stop"() : () -> ()
    %52 = arith.addf %51, %21 : vector<1x8x8xf32>
    %cst_43 = arith.constant dense<0xFF800000> : vector<1x8xf32>
    %53 = vector.multi_reduction <maximumf>, %52, %cst_43 [2] : vector<1x8x8xf32> to vector<1x8xf32>
    %54 = vector.shape_cast %53 : vector<1x8xf32> to vector<1x8x1xf32>
    %55 = vector.broadcast %54 : vector<1x8x1xf32> to vector<1x8x8xf32>
    %56 = arith.subf %52, %55 : vector<1x8x8xf32>
    %57 = math.exp %56 : vector<1x8x8xf32>
    %cst_44 = arith.constant dense<0.000000e+00> : vector<1x8xf32>
    %58 = vector.multi_reduction <add>, %57, %cst_44 [2] : vector<1x8x8xf32> to vector<1x8xf32>
    %59 = vector.shape_cast %58 : vector<1x8xf32> to vector<1x8x1xf32>
    %60 = tpu.reciprocal %59 {approx = true} : vector<1x8x1xf32> -> vector<1x8x1xf32>
    %61 = vector.broadcast %60 : vector<1x8x1xf32> to vector<1x8x8xf32>
    %62 = arith.mulf %57, %61 : vector<1x8x8xf32>
    %63 = arith.truncf %62 : vector<1x8x8xf32> to vector<1x8x8xbf16>
    "tpu.trace_start"() <{level = 10 : i32, message = "bqk,bkd->bqd"}> : () -> ()
    %cst_45 = arith.constant dense<0.000000e+00> : vector<1x8x8xf32>
    %64 = tpu.matmul %63, %50, %cst_45 {dimension_numbers = #tpu.dot_dimension_numbers<[2], [1], [1], [2], [0, 0, 0, 1, 1, 2], [0], [0]>} : vector<1x8x8xbf16>, vector<1x8x8xbf16>, vector<1x8x8xf32> -> vector<1x8x8xf32>
    "tpu.trace_stop"() : () -> ()
    %65 = vector.shape_cast %64 : vector<1x8x8xf32> to vector<8x8xf32>
    %66 = arith.truncf %65 : vector<8x8xf32> to vector<8x8xbf16>
    %c0_46 = arith.constant 0 : index
    %c8_47 = arith.constant 8 : index
    %67 = vector.load %arg19[%c0_46, %c8_47] : memref<8x32xbf16, #tpu.memory_space<vmem>>, vector<8x8xbf16>
    tpu.vector_store %arg19[%c0_46, %c8_47], %66 {strides = array<i32>} : memref<8x32xbf16, #tpu.memory_space<vmem>>, vector<8x8xbf16>,
    %c0_48 = arith.constant 0 : index
    %c16 = arith.constant 16 : index
    %68 = vector.load %arg20[%c0_48, %c16] : memref<8x32xbf16, #tpu.memory_space<vmem>>, vector<8x8xbf16>
    %69 = vector.shape_cast %68 : vector<8x8xbf16> to vector<1x8x8xbf16>
    %c0_49 = arith.constant 0 : index
    %c16_50 = arith.constant 16 : index
    %70 = vector.load %arg21[%c0_49, %c16_50] : memref<8x32xbf16, #tpu.memory_space<vmem>>, vector<8x8xbf16>
    %71 = vector.shape_cast %70 : vector<8x8xbf16> to vector<1x8x8xbf16>
    %c0_51 = arith.constant 0 : index
    %c16_52 = arith.constant 16 : index
    %72 = vector.load %arg22[%c0_51, %c16_52] : memref<8x32xbf16, #tpu.memory_space<vmem>>, vector<8x8xbf16>
    %73 = vector.shape_cast %72 : vector<8x8xbf16> to vector<1x8x8xbf16>
    "tpu.trace_start"() <{level = 10 : i32, message = "bqd,bkd->bqk"}> : () -> ()
    %cst_53 = arith.constant dense<0.000000e+00> : vector<1x8x8xf32>
    %74 = tpu.matmul %69, %71, %cst_53 {dimension_numbers = #tpu.dot_dimension_numbers<[2], [2], [1], [1], [0, 0, 0, 1, 1, 1], [0], [0]>} : vector<1x8x8xbf16>, vector<1x8x8xbf16>, vector<1x8x8xf32> -> vector<1x8x8xf32>
    "tpu.trace_stop"() : () -> ()
    %75 = arith.addf %74, %21 : vector<1x8x8xf32>
    %cst_54 = arith.constant dense<0xFF800000> : vector<1x8xf32>
    %76 = vector.multi_reduction <maximumf>, %75, %cst_54 [2] : vector<1x8x8xf32> to vector<1x8xf32>
    %77 = vector.shape_cast %76 : vector<1x8xf32> to vector<1x8x1xf32>
    %78 = vector.broadcast %77 : vector<1x8x1xf32> to vector<1x8x8xf32>
    %79 = arith.subf %75, %78 : vector<1x8x8xf32>
    %80 = math.exp %79 : vector<1x8x8xf32>
    %cst_55 = arith.constant dense<0.000000e+00> : vector<1x8xf32>
    %81 = vector.multi_reduction <add>, %80, %cst_55 [2] : vector<1x8x8xf32> to vector<1x8xf32>
    %82 = vector.shape_cast %81 : vector<1x8xf32> to vector<1x8x1xf32>
    %83 = tpu.reciprocal %82 {approx = true} : vector<1x8x1xf32> -> vector<1x8x1xf32>
    %84 = vector.broadcast %83 : vector<1x8x1xf32> to vector<1x8x8xf32>
    %85 = arith.mulf %80, %84 : vector<1x8x8xf32>
    %86 = arith.truncf %85 : vector<1x8x8xf32> to vector<1x8x8xbf16>
    "tpu.trace_start"() <{level = 10 : i32, message = "bqk,bkd->bqd"}> : () -> ()
    %cst_56 = arith.constant dense<0.000000e+00> : vector<1x8x8xf32>
    %87 = tpu.matmul %86, %73, %cst_56 {dimension_numbers = #tpu.dot_dimension_numbers<[2], [1], [1], [2], [0, 0, 0, 1, 1, 2], [0], [0]>} : vector<1x8x8xbf16>, vector<1x8x8xbf16>, vector<1x8x8xf32> -> vector<1x8x8xf32>
    "tpu.trace_stop"() : () -> ()
    %88 = vector.shape_cast %87 : vector<1x8x8xf32> to vector<8x8xf32>
    %89 = arith.truncf %88 : vector<8x8xf32> to vector<8x8xbf16>
    %c0_57 = arith.constant 0 : index
    %c16_58 = arith.constant 16 : index
    %90 = vector.load %arg19[%c0_57, %c16_58] : memref<8x32xbf16, #tpu.memory_space<vmem>>, vector<8x8xbf16>
    tpu.vector_store %arg19[%c0_57, %c16_58], %89 {strides = array<i32>} : memref<8x32xbf16, #tpu.memory_space<vmem>>, vector<8x8xbf16>,
    %c0_59 = arith.constant 0 : index
    %c24 = arith.constant 24 : index
    %91 = vector.load %arg20[%c0_59, %c24] : memref<8x32xbf16, #tpu.memory_space<vmem>>, vector<8x8xbf16>
    %92 = vector.shape_cast %91 : vector<8x8xbf16> to vector<1x8x8xbf16>
    %c0_60 = arith.constant 0 : index
    %c24_61 = arith.constant 24 : index
    %93 = vector.load %arg21[%c0_60, %c24_61] : memref<8x32xbf16, #tpu.memory_space<vmem>>, vector<8x8xbf16>
    %94 = vector.shape_cast %93 : vector<8x8xbf16> to vector<1x8x8xbf16>
    %c0_62 = arith.constant 0 : index
    %c24_63 = arith.constant 24 : index
    %95 = vector.load %arg22[%c0_62, %c24_63] : memref<8x32xbf16, #tpu.memory_space<vmem>>, vector<8x8xbf16>
    %96 = vector.shape_cast %95 : vector<8x8xbf16> to vector<1x8x8xbf16>
    "tpu.trace_start"() <{level = 10 : i32, message = "bqd,bkd->bqk"}> : () -> ()
    %cst_64 = arith.constant dense<0.000000e+00> : vector<1x8x8xf32>
    %97 = tpu.matmul %92, %94, %cst_64 {dimension_numbers = #tpu.dot_dimension_numbers<[2], [2], [1], [1], [0, 0, 0, 1, 1, 1], [0], [0]>} : vector<1x8x8xbf16>, vector<1x8x8xbf16>, vector<1x8x8xf32> -> vector<1x8x8xf32>
    "tpu.trace_stop"() : () -> ()
    %98 = arith.addf %97, %21 : vector<1x8x8xf32>
    %cst_65 = arith.constant dense<0xFF800000> : vector<1x8xf32>
    %99 = vector.multi_reduction <maximumf>, %98, %cst_65 [2] : vector<1x8x8xf32> to vector<1x8xf32>
    %100 = vector.shape_cast %99 : vector<1x8xf32> to vector<1x8x1xf32>
    %101 = vector.broadcast %100 : vector<1x8x1xf32> to vector<1x8x8xf32>
    %102 = arith.subf %98, %101 : vector<1x8x8xf32>
    %103 = math.exp %102 : vector<1x8x8xf32>
    %cst_66 = arith.constant dense<0.000000e+00> : vector<1x8xf32>
    %104 = vector.multi_reduction <add>, %103, %cst_66 [2] : vector<1x8x8xf32> to vector<1x8xf32>
    %105 = vector.shape_cast %104 : vector<1x8xf32> to vector<1x8x1xf32>
    %106 = tpu.reciprocal %105 {approx = true} : vector<1x8x1xf32> -> vector<1x8x1xf32>
    %107 = vector.broadcast %106 : vector<1x8x1xf32> to vector<1x8x8xf32>
    %108 = arith.mulf %103, %107 : vector<1x8x8xf32>
    %109 = arith.truncf %108 : vector<1x8x8xf32> to vector<1x8x8xbf16>
    "tpu.trace_start"() <{level = 10 : i32, message = "bqk,bkd->bqd"}> : () -> ()
    %cst_67 = arith.constant dense<0.000000e+00> : vector<1x8x8xf32>
    %110 = tpu.matmul %109, %96, %cst_67 {dimension_numbers = #tpu.dot_dimension_numbers<[2], [1], [1], [2], [0, 0, 0, 1, 1, 2], [0], [0]>} : vector<1x8x8xbf16>, vector<1x8x8xbf16>, vector<1x8x8xf32> -> vector<1x8x8xf32>
    "tpu.trace_stop"() : () -> ()
    %111 = vector.shape_cast %110 : vector<1x8x8xf32> to vector<8x8xf32>
    %112 = arith.truncf %111 : vector<8x8xf32> to vector<8x8xbf16>
    %c0_68 = arith.constant 0 : index
    %c24_69 = arith.constant 24 : index
    %113 = vector.load %arg19[%c0_68, %c24_69] : memref<8x32xbf16, #tpu.memory_space<vmem>>, vector<8x8xbf16>
    tpu.vector_store %arg19[%c0_68, %c24_69], %112 {strides = array<i32>} : memref<8x32xbf16, #tpu.memory_space<vmem>>, vector<8x8xbf16>,
    %c0_70 = arith.constant 0 : index
    %c0_71 = arith.constant 0 : index
    %114 = vector.load %arg19[%c0_70, %c0_71] : memref<8x32xbf16, #tpu.memory_space<vmem>>, vector<8x32xbf16>
    %c0_72 = arith.constant 0 : index
    %c0_73 = arith.constant 0 : index
    %115 = vector.load %arg8[%c0_72, %c0_73] : memref<32x32xbf16, #tpu.memory_space<vmem>>, vector<32x32xbf16>
    %cst_74 = arith.constant dense<0.000000e+00> : vector<8x32xf32>
    %116 = tpu.matmul %114, %115, %cst_74 {dimension_numbers = #tpu.dot_dimension_numbers<[1], [0], [0], [1], [0, 0, 1, 1], [], []>} : vector<8x32xbf16>, vector<32x32xbf16>, vector<8x32xf32> -> vector<8x32xf32>
    %c0_75 = arith.constant 0 : index
    %c0_76 = arith.constant 0 : index
    %117 = vector.load %arg9[%c0_75, %c0_76] : memref<1x32xf32, #tpu.memory_space<vmem>>, vector<1x32xf32>
    %118 = vector.broadcast %117 : vector<1x32xf32> to vector<8x32xf32>
    %119 = arith.addf %116, %118 : vector<8x32xf32>
    %120 = arith.addf %119, %0 : vector<8x32xf32>
    %c0_77 = arith.constant 0 : index
    %c0_78 = arith.constant 0 : index
    %121 = vector.load %arg10[%c0_77, %c0_78] : memref<1x32xf32, #tpu.memory_space<vmem>>, vector<1x32xf32>
    %c0_79 = arith.constant 0 : index
    %c0_80 = arith.constant 0 : index
    %122 = vector.load %arg11[%c0_79, %c0_80] : memref<1x32xf32, #tpu.memory_space<vmem>>, vector<1x32xf32>
    %cst_81 = arith.constant dense<0.000000e+00> : vector<8xf32>
    %123 = vector.multi_reduction <add>, %120, %cst_81 [1] : vector<8x32xf32> to vector<8xf32>
    %124 = vector.shape_cast %123 : vector<8xf32> to vector<8x1xf32>
    %cst_82 = arith.constant 3.200000e+01 : f32
    %125 = vector.broadcast %cst_82 : f32 to vector<8x1xf32>
    %126 = arith.divf %124, %125 : vector<8x1xf32>
    %127 = vector.broadcast %126 : vector<8x1xf32> to vector<8x32xf32>
    %128 = arith.subf %120, %127 : vector<8x32xf32>
    %129 = arith.mulf %128, %128 : vector<8x32xf32>
    %cst_83 = arith.constant dense<0.000000e+00> : vector<8xf32>
    %130 = vector.multi_reduction <add>, %129, %cst_83 [1] : vector<8x32xf32> to vector<8xf32>
    %131 = vector.shape_cast %130 : vector<8xf32> to vector<8x1xf32>
    %cst_84 = arith.constant 3.200000e+01 : f32
    %132 = vector.broadcast %cst_84 : f32 to vector<8x1xf32>
    %133 = arith.divf %131, %132 : vector<8x1xf32>
    %134 = vector.broadcast %126 : vector<8x1xf32> to vector<8x32xf32>
    %135 = arith.subf %120, %134 : vector<8x32xf32>
    %cst_85 = arith.constant 9.99999974E-6 : f32
    %136 = vector.broadcast %cst_85 : f32 to vector<8x1xf32>
    %137 = arith.addf %133, %136 : vector<8x1xf32>
    %138 = math.rsqrt %137 : vector<8x1xf32>
    %139 = vector.broadcast %138 : vector<8x1xf32> to vector<8x32xf32>
    %140 = arith.mulf %135, %139 : vector<8x32xf32>
    %141 = vector.broadcast %121 : vector<1x32xf32> to vector<8x32xf32>
    %142 = arith.mulf %140, %141 : vector<8x32xf32>
    %143 = vector.broadcast %122 : vector<1x32xf32> to vector<8x32xf32>
    %144 = arith.addf %142, %143 : vector<8x32xf32>
    %145 = arith.truncf %144 : vector<8x32xf32> to vector<8x32xbf16>
    %c0_86 = arith.constant 0 : index
    %c0_87 = arith.constant 0 : index
    %146 = vector.load %arg12[%c0_86, %c0_87] : memref<32x128xbf16, #tpu.memory_space<vmem>>, vector<32x128xbf16>
    %cst_88 = arith.constant dense<0.000000e+00> : vector<8x128xf32>
    %147 = tpu.matmul %145, %146, %cst_88 {dimension_numbers = #tpu.dot_dimension_numbers<[1], [0], [0], [1], [0, 0, 1, 1], [], []>} : vector<8x32xbf16>, vector<32x128xbf16>, vector<8x128xf32> -> vector<8x128xf32>
    %c0_89 = arith.constant 0 : index
    %c0_90 = arith.constant 0 : index
    %148 = vector.load %arg13[%c0_89, %c0_90] : memref<1x128xf32, #tpu.memory_space<vmem>>, vector<1x128xf32>
    %149 = vector.broadcast %148 : vector<1x128xf32> to vector<8x128xf32>
    %150 = arith.addf %147, %149 : vector<8x128xf32>
    %cst_91 = arith.constant 0.000000e+00 : f32
    %151 = vector.broadcast %cst_91 : f32 to vector<8x128xf32>
    %152 = arith.maximumf %150, %151 : vector<8x128xf32>
    %153 = arith.truncf %152 : vector<8x128xf32> to vector<8x128xbf16>
    %c0_92 = arith.constant 0 : index
    %c0_93 = arith.constant 0 : index
    %154 = vector.load %arg14[%c0_92, %c0_93] : memref<128x32xbf16, #tpu.memory_space<vmem>>, vector<128x32xbf16>
    %cst_94 = arith.constant dense<0.000000e+00> : vector<8x32xf32>
    %155 = tpu.matmul %153, %154, %cst_94 {dimension_numbers = #tpu.dot_dimension_numbers<[1], [0], [0], [1], [0, 0, 1, 1], [], []>} : vector<8x128xbf16>, vector<128x32xbf16>, vector<8x32xf32> -> vector<8x32xf32>
    %c0_95 = arith.constant 0 : index
    %c0_96 = arith.constant 0 : index
    %156 = vector.load %arg15[%c0_95, %c0_96] : memref<1x32xf32, #tpu.memory_space<vmem>>, vector<1x32xf32>
    %157 = vector.broadcast %156 : vector<1x32xf32> to vector<8x32xf32>
    %158 = arith.addf %155, %157 : vector<8x32xf32>
    %159 = arith.addf %158, %144 : vector<8x32xf32>
    %c0_97 = arith.constant 0 : index
    %c0_98 = arith.constant 0 : index
    %160 = vector.load %arg16[%c0_97, %c0_98] : memref<1x32xf32, #tpu.memory_space<vmem>>, vector<1x32xf32>
    %c0_99 = arith.constant 0 : index
    %c0_100 = arith.constant 0 : index
    %161 = vector.load %arg17[%c0_99, %c0_100] : memref<1x32xf32, #tpu.memory_space<vmem>>, vector<1x32xf32>
    %cst_101 = arith.constant dense<0.000000e+00> : vector<8xf32>
    %162 = vector.multi_reduction <add>, %159, %cst_101 [1] : vector<8x32xf32> to vector<8xf32>
    %163 = vector.shape_cast %162 : vector<8xf32> to vector<8x1xf32>
    %cst_102 = arith.constant 3.200000e+01 : f32
    %164 = vector.broadcast %cst_102 : f32 to vector<8x1xf32>
    %165 = arith.divf %163, %164 : vector<8x1xf32>
    %166 = vector.broadcast %165 : vector<8x1xf32> to vector<8x32xf32>
    %167 = arith.subf %159, %166 : vector<8x32xf32>
    %168 = arith.mulf %167, %167 : vector<8x32xf32>
    %cst_103 = arith.constant dense<0.000000e+00> : vector<8xf32>
    %169 = vector.multi_reduction <add>, %168, %cst_103 [1] : vector<8x32xf32> to vector<8xf32>
    %170 = vector.shape_cast %169 : vector<8xf32> to vector<8x1xf32>
    %cst_104 = arith.constant 3.200000e+01 : f32
    %171 = vector.broadcast %cst_104 : f32 to vector<8x1xf32>
    %172 = arith.divf %170, %171 : vector<8x1xf32>
    %173 = vector.broadcast %165 : vector<8x1xf32> to vector<8x32xf32>
    %174 = arith.subf %159, %173 : vector<8x32xf32>
    %cst_105 = arith.constant 9.99999974E-6 : f32
    %175 = vector.broadcast %cst_105 : f32 to vector<8x1xf32>
    %176 = arith.addf %172, %175 : vector<8x1xf32>
    %177 = math.rsqrt %176 : vector<8x1xf32>
    %178 = vector.broadcast %177 : vector<8x1xf32> to vector<8x32xf32>
    %179 = arith.mulf %174, %178 : vector<8x32xf32>
    %180 = vector.broadcast %160 : vector<1x32xf32> to vector<8x32xf32>
    %181 = arith.mulf %179, %180 : vector<8x32xf32>
    %182 = vector.broadcast %161 : vector<1x32xf32> to vector<8x32xf32>
    %183 = arith.addf %181, %182 : vector<8x32xf32>
    %c0_106 = arith.constant 0 : index
    %c0_107 = arith.constant 0 : index
    %184 = vector.load %arg18[%c0_106, %c0_107] : memref<8x32xf32, #tpu.memory_space<vmem>>, vector<8x32xf32>
    tpu.vector_store %arg18[%c0_106, %c0_107], %183 {strides = array<i32>} : memref<8x32xf32, #tpu.memory_space<vmem>>, vector<8x32xf32>,
    return
  }
  func.func @transform_0(%arg0: i32) -> (i32, i32) {
    %c0_i32 = arith.constant 0 : i32
    %c0_i32_0 = arith.constant 0 : i32
    return %arg0, %c0_i32 : i32, i32
  }
  func.func @transform_1(%arg0: i32) -> (i32, i32) {
    %c0_i32 = arith.constant 0 : i32
    %c0_i32_0 = arith.constant 0 : i32
    return %arg0, %c0_i32 : i32, i32
  }
  func.func @transform_2(%arg0: i32) -> (i32, i32) {
    %c0_i32 = arith.constant 0 : i32
    %c0_i32_0 = arith.constant 0 : i32
    return %arg0, %c0_i32 : i32, i32
  }
  func.func @transform_3(%arg0: i32) -> (i32, i32, i32) {
    %c0_i32 = arith.constant 0 : i32
    %c0_i32_0 = arith.constant 0 : i32
    %c0_i32_1 = arith.constant 0 : i32
    return %arg0, %c0_i32, %c0_i32_0 : i32, i32, i32
  }
  func.func @transform_4(%arg0: i32) -> (i32, i32) {
    %c0_i32 = arith.constant 0 : i32
    %c0_i32_0 = arith.constant 0 : i32
    %c0_i32_1 = arith.constant 0 : i32
    return %c0_i32, %c0_i32_0 : i32, i32
  }
  func.func @transform_5(%arg0: i32) -> (i32, i32) {
    %c0_i32 = arith.constant 0 : i32
    %c0_i32_0 = arith.constant 0 : i32
    %c0_i32_1 = arith.constant 0 : i32
    return %c0_i32, %c0_i32_0 : i32, i32
  }
  func.func @transform_6(%arg0: i32) -> (i32, i32) {
    %c0_i32 = arith.constant 0 : i32
    %c0_i32_0 = arith.constant 0 : i32
    %c0_i32_1 = arith.constant 0 : i32
    return %c0_i32, %c0_i32_0 : i32, i32
  }
  func.func @transform_7(%arg0: i32) -> (i32, i32) {
    %c0_i32 = arith.constant 0 : i32
    %c0_i32_0 = arith.constant 0 : i32
    %c0_i32_1 = arith.constant 0 : i32
    return %c0_i32, %c0_i32_0 : i32, i32
  }
  func.func @transform_8(%arg0: i32) -> (i32, i32) {
    %c0_i32 = arith.constant 0 : i32
    %c0_i32_0 = arith.constant 0 : i32
    %c0_i32_1 = arith.constant 0 : i32
    return %c0_i32, %c0_i32_0 : i32, i32
  }
  func.func @transform_9(%arg0: i32) -> (i32, i32) {
    %c0_i32 = arith.constant 0 : i32
    %c0_i32_0 = arith.constant 0 : i32
    %c0_i32_1 = arith.constant 0 : i32
    return %c0_i32, %c0_i32_0 : i32, i32
  }
  func.func @transform_10(%arg0: i32) -> (i32, i32) {
    %c0_i32 = arith.constant 0 : i32
    %c0_i32_0 = arith.constant 0 : i32
    %c0_i32_1 = arith.constant 0 : i32
    return %c0_i32, %c0_i32_0 : i32, i32
  }
  func.func @transform_11(%arg0: i32) -> (i32, i32) {
    %c0_i32 = arith.constant 0 : i32
    %c0_i32_0 = arith.constant 0 : i32
    %c0_i32_1 = arith.constant 0 : i32
    return %c0_i32, %c0_i32_0 : i32, i32
  }
  func.func @transform_12(%arg0: i32) -> (i32, i32) {
    %c0_i32 = arith.constant 0 : i32
    %c0_i32_0 = arith.constant 0 : i32
    %c0_i32_1 = arith.constant 0 : i32
    return %c0_i32, %c0_i32_0 : i32, i32
  }
  func.func @transform_13(%arg0: i32) -> (i32, i32) {
    %c0_i32 = arith.constant 0 : i32
    %c0_i32_0 = arith.constant 0 : i32
    %c0_i32_1 = arith.constant 0 : i32
    return %c0_i32, %c0_i32_0 : i32, i32
  }
  func.func @transform_14(%arg0: i32) -> (i32, i32) {
    %c0_i32 = arith.constant 0 : i32
    %c0_i32_0 = arith.constant 0 : i32
    %c0_i32_1 = arith.constant 0 : i32
    return %c0_i32, %c0_i32_0 : i32, i32
  }
  func.func @transform_15(%arg0: i32) -> (i32, i32) {
    %c0_i32 = arith.constant 0 : i32
    %c0_i32_0 = arith.constant 0 : i32
    %c0_i32_1 = arith.constant 0 : i32
    return %c0_i32, %c0_i32_0 : i32, i32
  }
  func.func @transform_16(%arg0: i32) -> (i32, i32) {
    %c0_i32 = arith.constant 0 : i32
    %c0_i32_0 = arith.constant 0 : i32
    %c0_i32_1 = arith.constant 0 : i32
    return %c0_i32, %c0_i32_0 : i32, i32
  }
  func.func @transform_17(%arg0: i32) -> (i32, i32) {
    %c0_i32 = arith.constant 0 : i32
    %c0_i32_0 = arith.constant 0 : i32
    return %arg0, %c0_i32 : i32, i32
  }
}

</mosaic_0001>

<llo_original>
// kernel: tpu_custom_call.1
$region0: #{tpu_custom_call.1}
  #allocation0 [shape = 'u32[]', space=smem, size = 0x4, offset = 0x4, fixed_abs, tag = 'smem constant byte address 0x4 - core index']
  #allocation1 [shape = 'u32[72,128]{1,0:T(1,128)}', space=vmem, size = 0x9000, scoped, tag = 'internal scratch']
  #allocation2 [shape = 'bf16[8,32]{1,0:T(8,128)(2,1)}', space=vmem, size = 0x800, scoped, tag = 'scratch operand']
  #allocation3 [shape = 'bf16[8,32]{1,0:T(8,128)(2,1)}', space=vmem, size = 0x800, scoped, tag = 'scratch operand']
  #allocation4 [shape = 'bf16[8,32]{1,0:T(8,128)(2,1)}', space=vmem, size = 0x800, scoped, tag = 'scratch operand']
  #allocation5 [shape = 'bf16[8,32]{1,0:T(8,128)(2,1)}', space=vmem, size = 0x800, scoped, tag = 'scratch operand']
  %s0 = inlined_call_operand.vmem [shape: f32[16,32], index: 0, kind: input, shape index: {}]
  %s1 = inlined_call_operand.hbm [shape: bf16[16,32], index: 1, kind: input, shape index: {}]
  %s2 = inlined_call_operand.hbm [shape: bf16[16,32], index: 2, kind: input, shape index: {}]
  %s3 = inlined_call_operand.hbm [shape: bf16[2,8,8], index: 3, kind: input, shape index: {}]
  %s4 = inlined_call_operand.vmem [shape: bf16[32,32], index: 4, kind: input, shape index: {}]
  %s5 = inlined_call_operand.vmem [shape: bf16[32,32], index: 5, kind: input, shape index: {}]
  %s6 = inlined_call_operand.vmem [shape: bf16[32,32], index: 6, kind: input, shape index: {}]
  %s7 = inlined_call_operand.vmem [shape: bf16[32,32], index: 7, kind: input, shape index: {}]
  %s8 = inlined_call_operand.vmem [shape: f32[1,32], index: 8, kind: input, shape index: {}]
  %s9 = inlined_call_operand.vmem [shape: f32[1,32], index: 9, kind: input, shape index: {}]
  %s10 = inlined_call_operand.vmem [shape: f32[1,32], index: 10, kind: input, shape index: {}]
  %s11 = inlined_call_operand.hbm [shape: bf16[32,128], index: 11, kind: input, shape index: {}]
  %s12 = inlined_call_operand.vmem [shape: f32[1,128], index: 12, kind: input, shape index: {}]
  %s13 = inlined_call_operand.vmem [shape: bf16[128,32], index: 13, kind: input, shape index: {}]
  %s14 = inlined_call_operand.vmem [shape: f32[1,32], index: 14, kind: input, shape index: {}]
  %s15 = inlined_call_operand.vmem [shape: f32[1,32], index: 15, kind: input, shape index: {}]
  %s16 = inlined_call_operand.vmem [shape: f32[1,32], index: 16, kind: input, shape index: {}]
  %s17 = inlined_call_operand.hbm [shape: f32[16,32], index: 17, kind: output, shape index: {}]
  %s18 = sld [smem:[#allocation0]]
  $region117: #{tpu_custom_call.1} parent=0
    _
  %s20 = ssub.s32 1, %s18
  %s21 = scalar_select 0, %s20, %s18
  $region1: #{tpu_custom_call.1} parent=0
    #allocation6 [shape = 'u8[4096]{0}', space=vmem, size = 0x1000, scoped, tag = 'input window, operand 1']
    #allocation7 [shape = 's32[2]{0}', space=sflag, size = 0x8, scoped, tag = 'scoped memory for tpu_custom_call.1']
    #allocation8 [shape = 's32[2]{0}', space=sflag, size = 0x8, scoped, tag = 'scoped memory for tpu_custom_call.1']
    #allocation9 [shape = 'u8[4096]{0}', space=vmem, size = 0x1000, scoped, tag = 'input window, operand 2']
    #allocation10 [shape = 's32[2]{0}', space=sflag, size = 0x8, scoped, tag = 'scoped memory for tpu_custom_call.1']
    #allocation11 [shape = 'u8[4096]{0}', space=vmem, size = 0x1000, scoped, tag = 'input window, operand 3']
    #allocation12 [shape = 'u8[8192]{0}', space=vmem, size = 0x2000, scoped, tag = 'input window, operand 11, single buffered']
    #allocation13 [shape = 's32[1]{0}', space=sflag, size = 0x4, scoped, tag = 'scoped memory for tpu_custom_call.1']
    #allocation14 [shape = 'u8[8192]{0}', space=vmem, size = 0x2000, scoped, tag = 'output window, operand 0']
    %22 = vsyncpa [#allocation7], 0
    %s23 = scalar_lea.sflag [#allocation7], 1
    %24 = vsyncpa %s23, 0
    %25 = vsyncpa [#allocation10], 0
    %s26 = scalar_lea.sflag [#allocation10], 1
    %27 = vsyncpa %s26, 0
    %28 = vsyncpa [#allocation13], 0
    %29 = vsyncpa [#allocation8], 0
    %s30 = scalar_lea.sflag [#allocation8], 1
    %31 = vsyncpa %s30, 0
    loop: start=0, step=1, limit=4
    $region2: #{tpu_custom_call.1} parent=1 // loop_pre_header
      _
    $region3: #{tpu_custom_call.1} parent=1 // loop_header
      %s33 = sphi 0, %s37
      %p34 = scmp.ge.s32.totalorder %s33, 4
      %s43 = sphi 0, %s45
      %s46 = sphi 0, %s43
      %s47 = sphi 0, %s46
      %s63 = sphi 0, %s47
      %s69 = sphi 0, %s71
      %s72 = sphi 0, %s69
      %s73 = sphi 0, %s72
      %s89 = sphi 0, %s73
      %s95 = sphi 0, %s97
      %s98 = sphi 0, %s95
      %s99 = sphi 0, %s98
      %s115 = sphi 0, %s99
      %s121 = sphi 0, %s123
      %s124 = sphi 0, %s121
      %s125 = sphi 0, %s124
      %s141 = sphi 0, %s125
      %s145 = sphi 0, %s145
      %s147 = sphi 0, %s145
      %s148 = sphi 0, %s147
      %s162 = sphi 0, %s148
      %s166 = sphi 0, %s166
      %s168 = sphi 0, %s166
      %s169 = sphi 0, %s168
      %s183 = sphi 0, %s169
      %s187 = sphi 0, %s187
      %s189 = sphi 0, %s187
      %s190 = sphi 0, %s189
      %s204 = sphi 0, %s190
      %s208 = sphi 0, %s208
      %s210 = sphi 0, %s208
      %s211 = sphi 0, %s210
      %s225 = sphi 0, %s211
      %s229 = sphi 0, %s229
      %s231 = sphi 0, %s229
      %s232 = sphi 0, %s231
      %s246 = sphi 0, %s232
      %s250 = sphi 0, %s250
      %s252 = sphi 0, %s250
      %s253 = sphi 0, %s252
      %s267 = sphi 0, %s253
      %s271 = sphi 0, %s271
      %s273 = sphi 0, %s271
      %s274 = sphi 0, %s273
      %s288 = sphi 0, %s274
      %s292 = sphi 0, %s292
      %s294 = sphi 0, %s292
      %s295 = sphi 0, %s294
      %s309 = sphi 0, %s295
      %s313 = sphi 0, %s313
      %s315 = sphi 0, %s313
      %s316 = sphi 0, %s315
      %s330 = sphi 0, %s316
      %s334 = sphi 0, %s334
      %s336 = sphi 0, %s334
      %s337 = sphi 0, %s336
      %s351 = sphi 0, %s337
      %s355 = sphi 0, %s355
      %s357 = sphi 0, %s355
      %s358 = sphi 0, %s357
      %s372 = sphi 0, %s358
      %s376 = sphi 0, %s376
      %s378 = sphi 0, %s376
      %s379 = sphi 0, %s378
      %s393 = sphi 0, %s379
      %s397 = sphi 0, %s397
      %s399 = sphi 0, %s397
      %s400 = sphi 0, %s399
      %s414 = sphi 0, %s400
      %s420 = sphi 0, %s422
      %s423 = sphi 0, %s420
      %s424 = sphi 0, %s423
      %s440 = sphi 0, %s424
    $region4: #{tpu_custom_call.1} parent=1 // loop_header_branch
      %36 = sbr.rel (%p34) target = $region8
    $region5: #{tpu_custom_call.1} parent=1 // loop_body
      %s38 = ssub.s32 %s33, 1
      %s39 = ssub.s32 %s33, 2
      %s40 = sadd.s32 %s33, 1
      %s41 = ssub.s32 %s33, %s40
      %p42 = scmp.eq.s32.totalorder %s41, 0
      %s44 = sadd.s32 %s43, 1
      %s45 = scalar_select %p42, %s43, %s44
      %p48 = pneg %p42
      %p49 = scmp.eq.s32.totalorder %s33, 1
      %p50 = por %p48, %p49
      %p51 = scmp.ne.s32.totalorder %s43, %s46
      %p52 = scmp.eq.s32.totalorder %s33, 0
      %p53 = por %p51, %p52
      %p54 = scmp.ne.s32.totalorder %s43, %s46
      %p55 = scmp.eq.s32.totalorder %s38, 1
      %p56 = por %p54, %p55
      %p57 = scmp.ne.s32.totalorder %s46, %s47
      %p58 = scmp.eq.s32.totalorder %s38, 0
      %p59 = por %p57, %p58
      %p60 = scmp.ne.s32.totalorder %s46, %s47
      %p61 = scmp.eq.s32.totalorder %s39, 1
      %p62 = por %p60, %p61
      %p64 = scmp.ne.s32.totalorder %s47, %s63
      %p65 = scmp.eq.s32.totalorder %s39, 0
      %p66 = por %p64, %p65
      %s67 = ssub.s32 %s33, %s40
      %p68 = scmp.eq.s32.totalorder %s67, 0
      %s70 = sadd.s32 %s69, 1
      %s71 = scalar_select %p68, %s69, %s70
      %p74 = pneg %p68
      %p75 = scmp.eq.s32.totalorder %s33, 1
      %p76 = por %p74, %p75
      %p77 = scmp.ne.s32.totalorder %s69, %s72
      %p78 = scmp.eq.s32.totalorder %s33, 0
      %p79 = por %p77, %p78
      %p80 = scmp.ne.s32.totalorder %s69, %s72
      %p81 = scmp.eq.s32.totalorder %s38, 1
      %p82 = por %p80, %p81
      %p83 = scmp.ne.s32.totalorder %s72, %s73
      %p84 = scmp.eq.s32.totalorder %s38, 0
      %p85 = por %p83, %p84
      %p86 = scmp.ne.s32.totalorder %s72, %s73
      %p87 = scmp.eq.s32.totalorder %s39, 1
      %p88 = por %p86, %p87
      %p90 = scmp.ne.s32.totalorder %s73, %s89
      %p91 = scmp.eq.s32.totalorder %s39, 0
      %p92 = por %p90, %p91
      %s93 = ssub.s32 %s33, %s40
      %p94 = scmp.eq.s32.totalorder %s93, 0
      %s96 = sadd.s32 %s95, 1
      %s97 = scalar_select %p94, %s95, %s96
      %p100 = pneg %p94
      %p101 = scmp.eq.s32.totalorder %s33, 1
      %p102 = por %p100, %p101
      %p103 = scmp.ne.s32.totalorder %s95, %s98
      %p104 = scmp.eq.s32.totalorder %s33, 0
      %p105 = por %p103, %p104
      %p106 = scmp.ne.s32.totalorder %s95, %s98
      %p107 = scmp.eq.s32.totalorder %s38, 1
      %p108 = por %p106, %p107
      %p109 = scmp.ne.s32.totalorder %s98, %s99
      %p110 = scmp.eq.s32.totalorder %s38, 0
      %p111 = por %p109, %p110
      %p112 = scmp.ne.s32.totalorder %s98, %s99
      %p113 = scmp.eq.s32.totalorder %s39, 1
      %p114 = por %p112, %p113
      %p116 = scmp.ne.s32.totalorder %s99, %s115
      %p117 = scmp.eq.s32.totalorder %s39, 0
      %p118 = por %p116, %p117
      %s119 = ssub.s32 %s33, %s40
      %p120 = scmp.eq.s32.totalorder %s119, 0
      %s122 = sadd.s32 %s121, 1
      %s123 = scalar_select %p120, %s121, %s122
      %p126 = pneg %p120
      %p127 = scmp.eq.s32.totalorder %s33, 1
      %p128 = por %p126, %p127
      %p129 = scmp.ne.s32.totalorder %s121, %s124
      %p130 = scmp.eq.s32.totalorder %s33, 0
      %p131 = por %p129, %p130
      %p132 = scmp.ne.s32.totalorder %s121, %s124
      %p133 = scmp.eq.s32.totalorder %s38, 1
      %p134 = por %p132, %p133
      %p135 = scmp.ne.s32.totalorder %s124, %s125
      %p136 = scmp.eq.s32.totalorder %s38, 0
      %p137 = por %p135, %p136
      %p138 = scmp.ne.s32.totalorder %s124, %s125
      %p139 = scmp.eq.s32.totalorder %s39, 1
      %p140 = por %p138, %p139
      %p142 = scmp.ne.s32.totalorder %s125, %s141
      %p143 = scmp.eq.s32.totalorder %s39, 0
      %p144 = por %p142, %p143
      %s146 = sadd.s32 %s145, 1
      %p149 = scmp.eq.s32.totalorder %s33, 1
      %p150 = scmp.ne.s32.totalorder %s145, %s147
      %p151 = scmp.eq.s32.totalorder %s33, 0
      %p152 = por %p150, %p151
      %p153 = scmp.ne.s32.totalorder %s145, %s147
      %p154 = scmp.eq.s32.totalorder %s38, 1
      %p155 = por %p153, %p154
      %p156 = scmp.ne.s32.totalorder %s147, %s148
      %p157 = scmp.eq.s32.totalorder %s38, 0
      %p158 = por %p156, %p157
      %p159 = scmp.ne.s32.totalorder %s147, %s148
      %p160 = scmp.eq.s32.totalorder %s39, 1
      %p161 = por %p159, %p160
      %p163 = scmp.ne.s32.totalorder %s148, %s162
      %p164 = scmp.eq.s32.totalorder %s39, 0
      %p165 = por %p163, %p164
      %s167 = sadd.s32 %s166, 1
      %p170 = scmp.eq.s32.totalorder %s33, 1
      %p171 = scmp.ne.s32.totalorder %s166, %s168
      %p172 = scmp.eq.s32.totalorder %s33, 0
      %p173 = por %p171, %p172
      %p174 = scmp.ne.s32.totalorder %s166, %s168
      %p175 = scmp.eq.s32.totalorder %s38, 1
      %p176 = por %p174, %p175
      %p177 = scmp.ne.s32.totalorder %s168, %s169
      %p178 = scmp.eq.s32.totalorder %s38, 0
      %p179 = por %p177, %p178
      %p180 = scmp.ne.s32.totalorder %s168, %s169
      %p181 = scmp.eq.s32.totalorder %s39, 1
      %p182 = por %p180, %p181
      %p184 = scmp.ne.s32.totalorder %s169, %s183
      %p185 = scmp.eq.s32.totalorder %s39, 0
      %p186 = por %p184, %p185
      %s188 = sadd.s32 %s187, 1
      %p191 = scmp.eq.s32.totalorder %s33, 1
      %p192 = scmp.ne.s32.totalorder %s187, %s189
      %p193 = scmp.eq.s32.totalorder %s33, 0
      %p194 = por %p192, %p193
      %p195 = scmp.ne.s32.totalorder %s187, %s189
      %p196 = scmp.eq.s32.totalorder %s38, 1
      %p197 = por %p195, %p196
      %p198 = scmp.ne.s32.totalorder %s189, %s190
      %p199 = scmp.eq.s32.totalorder %s38, 0
      %p200 = por %p198, %p199
      %p201 = scmp.ne.s32.totalorder %s189, %s190
      %p202 = scmp.eq.s32.totalorder %s39, 1
      %p203 = por %p201, %p202
      %p205 = scmp.ne.s32.totalorder %s190, %s204
      %p206 = scmp.eq.s32.totalorder %s39, 0
      %p207 = por %p205, %p206
      %s209 = sadd.s32 %s208, 1
      %p212 = scmp.eq.s32.totalorder %s33, 1
      %p213 = scmp.ne.s32.totalorder %s208, %s210
      %p214 = scmp.eq.s32.totalorder %s33, 0
      %p215 = por %p213, %p214
      %p216 = scmp.ne.s32.totalorder %s208, %s210
      %p217 = scmp.eq.s32.totalorder %s38, 1
      %p218 = por %p216, %p217
      %p219 = scmp.ne.s32.totalorder %s210, %s211
      %p220 = scmp.eq.s32.totalorder %s38, 0
      %p221 = por %p219, %p220
      %p222 = scmp.ne.s32.totalorder %s210, %s211
      %p223 = scmp.eq.s32.totalorder %s39, 1
      %p224 = por %p222, %p223
      %p226 = scmp.ne.s32.totalorder %s211, %s225
      %p227 = scmp.eq.s32.totalorder %s39, 0
      %p228 = por %p226, %p227
      %s230 = sadd.s32 %s229, 1
      %p233 = scmp.eq.s32.totalorder %s33, 1
      %p234 = scmp.ne.s32.totalorder %s229, %s231
      %p235 = scmp.eq.s32.totalorder %s33, 0
      %p236 = por %p234, %p235
      %p237 = scmp.ne.s32.totalorder %s229, %s231
      %p238 = scmp.eq.s32.totalorder %s38, 1
      %p239 = por %p237, %p238
      %p240 = scmp.ne.s32.totalorder %s231, %s232
      %p241 = scmp.eq.s32.totalorder %s38, 0
      %p242 = por %p240, %p241
      %p243 = scmp.ne.s32.totalorder %s231, %s232
      %p244 = scmp.eq.s32.totalorder %s39, 1
      %p245 = por %p243, %p244
      %p247 = scmp.ne.s32.totalorder %s232, %s246
      %p248 = scmp.eq.s32.totalorder %s39, 0
      %p249 = por %p247, %p248
      %s251 = sadd.s32 %s250, 1
      %p254 = scmp.eq.s32.totalorder %s33, 1
      %p255 = scmp.ne.s32.totalorder %s250, %s252
      %p256 = scmp.eq.s32.totalorder %s33, 0
      %p257 = por %p255, %p256
      %p258 = scmp.ne.s32.totalorder %s250, %s252
      %p259 = scmp.eq.s32.totalorder %s38, 1
      %p260 = por %p258, %p259
      %p261 = scmp.ne.s32.totalorder %s252, %s253
      %p262 = scmp.eq.s32.totalorder %s38, 0
      %p263 = por %p261, %p262
      %p264 = scmp.ne.s32.totalorder %s252, %s253
      %p265 = scmp.eq.s32.totalorder %s39, 1
      %p266 = por %p264, %p265
      %p268 = scmp.ne.s32.totalorder %s253, %s267
      %p269 = scmp.eq.s32.totalorder %s39, 0
      %p270 = por %p268, %p269
      %s272 = sadd.s32 %s271, 1
      %p275 = scmp.eq.s32.totalorder %s33, 1
      %p276 = scmp.ne.s32.totalorder %s271, %s273
      %p277 = scmp.eq.s32.totalorder %s33, 0
      %p278 = por %p276, %p277
      %p279 = scmp.ne.s32.totalorder %s271, %s273
      %p280 = scmp.eq.s32.totalorder %s38, 1
      %p281 = por %p279, %p280
      %p282 = scmp.ne.s32.totalorder %s273, %s274
      %p283 = scmp.eq.s32.totalorder %s38, 0
      %p284 = por %p282, %p283
      %p285 = scmp.ne.s32.totalorder %s273, %s274
      %p286 = scmp.eq.s32.totalorder %s39, 1
      %p287 = por %p285, %p286
      %p289 = scmp.ne.s32.totalorder %s274, %s288
      %p290 = scmp.eq.s32.totalorder %s39, 0
      %p291 = por %p289, %p290
      %s293 = sadd.s32 %s292, 1
      %p296 = scmp.eq.s32.totalorder %s33, 1
      %p297 = scmp.ne.s32.totalorder %s292, %s294
      %p298 = scmp.eq.s32.totalorder %s33, 0
      %p299 = por %p297, %p298
      %p300 = scmp.ne.s32.totalorder %s292, %s294
      %p301 = scmp.eq.s32.totalorder %s38, 1
      %p302 = por %p300, %p301
      %p303 = scmp.ne.s32.totalorder %s294, %s295
      %p304 = scmp.eq.s32.totalorder %s38, 0
      %p305 = por %p303, %p304
      %p306 = scmp.ne.s32.totalorder %s294, %s295
      %p307 = scmp.eq.s32.totalorder %s39, 1
      %p308 = por %p306, %p307
      %p310 = scmp.ne.s32.totalorder %s295, %s309
      %p311 = scmp.eq.s32.totalorder %s39, 0
      %p312 = por %p310, %p311
      %s314 = sadd.s32 %s313, 1
      %p317 = scmp.eq.s32.totalorder %s33, 1
      %p318 = scmp.ne.s32.totalorder %s313, %s315
      %p319 = scmp.eq.s32.totalorder %s33, 0
      %p320 = por %p318, %p319
      %p321 = scmp.ne.s32.totalorder %s313, %s315
      %p322 = scmp.eq.s32.totalorder %s38, 1
      %p323 = por %p321, %p322
      %p324 = scmp.ne.s32.totalorder %s315, %s316
      %p325 = scmp.eq.s32.totalorder %s38, 0
      %p326 = por %p324, %p325
      %p327 = scmp.ne.s32.totalorder %s315, %s316
      %p328 = scmp.eq.s32.totalorder %s39, 1
      %p329 = por %p327, %p328
      %p331 = scmp.ne.s32.totalorder %s316, %s330
      %p332 = scmp.eq.s32.totalorder %s39, 0
      %p333 = por %p331, %p332
      %s335 = sadd.s32 %s334, 1
      %p338 = scmp.eq.s32.totalorder %s33, 1
      %p339 = scmp.ne.s32.totalorder %s334, %s336
      %p340 = scmp.eq.s32.totalorder %s33, 0
      %p341 = por %p339, %p340
      %p342 = scmp.ne.s32.totalorder %s334, %s336
      %p343 = scmp.eq.s32.totalorder %s38, 1
      %p344 = por %p342, %p343
      %p345 = scmp.ne.s32.totalorder %s336, %s337
      %p346 = scmp.eq.s32.totalorder %s38, 0
      %p347 = por %p345, %p346
      %p348 = scmp.ne.s32.totalorder %s336, %s337
      %p349 = scmp.eq.s32.totalorder %s39, 1
      %p350 = por %p348, %p349
      %p352 = scmp.ne.s32.totalorder %s337, %s351
      %p353 = scmp.eq.s32.totalorder %s39, 0
      %p354 = por %p352, %p353
      %s356 = sadd.s32 %s355, 1
      %p359 = scmp.eq.s32.totalorder %s33, 1
      %p360 = scmp.ne.s32.totalorder %s355, %s357
      %p361 = scmp.eq.s32.totalorder %s33, 0
      %p362 = por %p360, %p361
      %p363 = scmp.ne.s32.totalorder %s355, %s357
      %p364 = scmp.eq.s32.totalorder %s38, 1
      %p365 = por %p363, %p364
      %p366 = scmp.ne.s32.totalorder %s357, %s358
      %p367 = scmp.eq.s32.totalorder %s38, 0
      %p368 = por %p366, %p367
      %p369 = scmp.ne.s32.totalorder %s357, %s358
      %p370 = scmp.eq.s32.totalorder %s39, 1
      %p371 = por %p369, %p370
      %p373 = scmp.ne.s32.totalorder %s358, %s372
      %p374 = scmp.eq.s32.totalorder %s39, 0
      %p375 = por %p373, %p374
      %s377 = sadd.s32 %s376, 1
      %p380 = scmp.eq.s32.totalorder %s33, 1
      %p381 = scmp.ne.s32.totalorder %s376, %s378
      %p382 = scmp.eq.s32.totalorder %s33, 0
      %p383 = por %p381, %p382
      %p384 = scmp.ne.s32.totalorder %s376, %s378
      %p385 = scmp.eq.s32.totalorder %s38, 1
      %p386 = por %p384, %p385
      %p387 = scmp.ne.s32.totalorder %s378, %s379
      %p388 = scmp.eq.s32.totalorder %s38, 0
      %p389 = por %p387, %p388
      %p390 = scmp.ne.s32.totalorder %s378, %s379
      %p391 = scmp.eq.s32.totalorder %s39, 1
      %p392 = por %p390, %p391
      %p394 = scmp.ne.s32.totalorder %s379, %s393
      %p395 = scmp.eq.s32.totalorder %s39, 0
      %p396 = por %p394, %p395
      %s398 = sadd.s32 %s397, 1
      %p401 = scmp.eq.s32.totalorder %s33, 1
      %p402 = scmp.ne.s32.totalorder %s397, %s399
      %p403 = scmp.eq.s32.totalorder %s33, 0
      %p404 = por %p402, %p403
      %p405 = scmp.ne.s32.totalorder %s397, %s399
      %p406 = scmp.eq.s32.totalorder %s38, 1
      %p407 = por %p405, %p406
      %p408 = scmp.ne.s32.totalorder %s399, %s400
      %p409 = scmp.eq.s32.totalorder %s38, 0
      %p410 = por %p408, %p409
      %p411 = scmp.ne.s32.totalorder %s399, %s400
      %p412 = scmp.eq.s32.totalorder %s39, 1
      %p413 = por %p411, %p412
      %p415 = scmp.ne.s32.totalorder %s400, %s414
      %p416 = scmp.eq.s32.totalorder %s39, 0
      %p417 = por %p415, %p416
      %s418 = ssub.s32 %s33, %s40
      %p419 = scmp.eq.s32.totalorder %s418, 0
      %s421 = sadd.s32 %s420, 1
      %s422 = scalar_select %p419, %s420, %s421
      %p425 = pneg %p419
      %p426 = scmp.eq.s32.totalorder %s33, 1
      %p427 = por %p425, %p426
      %p428 = scmp.ne.s32.totalorder %s420, %s423
      %p429 = scmp.eq.s32.totalorder %s33, 0
      %p430 = por %p428, %p429
      %p431 = scmp.ne.s32.totalorder %s420, %s423
      %p432 = scmp.eq.s32.totalorder %s38, 1
      %p433 = por %p431, %p432
      %p434 = scmp.ne.s32.totalorder %s423, %s424
      %p435 = scmp.eq.s32.totalorder %s38, 0
      %p436 = por %p434, %p435
      %p437 = scmp.ne.s32.totalorder %s423, %s424
      %p438 = scmp.eq.s32.totalorder %s39, 1
      %p439 = por %p437, %p438
      %p441 = scmp.ne.s32.totalorder %s424, %s440
      %p442 = scmp.eq.s32.totalorder %s39, 0
      %p443 = por %p441, %p442
      %p444 = scmp.le.s32.totalorder 1, %s33
      %p445 = scmp.lt.s32.totalorder %s33, 3
      %p446 = pnand %p444, %p445
      %p447 = pneg %p446
      // Predicated region
      $region9: #{tpu_custom_call.1} parent=5 // pred_check
        _
      $region10: #{tpu_custom_call.1} parent=5 // pred_check_branch
        %449 = sbr.rel (%p446) target = $region12
      $region11: #{tpu_custom_call.1} parent=5 // pred_region
        %s450 = ssub.s32 %s33, 1
        // Predicated region
        $region13: #{tpu_custom_call.1} parent=11 // pred_check
          %p451 = pneg %p158
        $region14: #{tpu_custom_call.1} parent=11 // pred_check_branch
          %453 = sbr.rel (%p451) target = $region16
        $region15: #{tpu_custom_call.1} parent=11 // pred_region
          _
        $region16: #{tpu_custom_call.1} parent=11 // pred_fallthru
          _
        // Predicated region
        $region17: #{tpu_custom_call.1} parent=11 // pred_check
          %p454 = pneg %p179
        $region18: #{tpu_custom_call.1} parent=11 // pred_check_branch
          %456 = sbr.rel (%p454) target = $region20
        $region19: #{tpu_custom_call.1} parent=11 // pred_region
          _
        $region20: #{tpu_custom_call.1} parent=11 // pred_fallthru
          _
        // Predicated region
        $region21: #{tpu_custom_call.1} parent=11 // pred_check
          %p457 = pneg %p200
        $region22: #{tpu_custom_call.1} parent=11 // pred_check_branch
          %459 = sbr.rel (%p457) target = $region24
        $region23: #{tpu_custom_call.1} parent=11 // pred_region
          _
        $region24: #{tpu_custom_call.1} parent=11 // pred_fallthru
          _
        // Predicated region
        $region25: #{tpu_custom_call.1} parent=11 // pred_check
          %p460 = pneg %p221
        $region26: #{tpu_custom_call.1} parent=11 // pred_check_branch
          %462 = sbr.rel (%p460) target = $region28
        $region27: #{tpu_custom_call.1} parent=11 // pred_region
          _
        $region28: #{tpu_custom_call.1} parent=11 // pred_fallthru
          _
        // Predicated region
        $region29: #{tpu_custom_call.1} parent=11 // pred_check
          %p463 = pneg %p242
        $region30: #{tpu_custom_call.1} parent=11 // pred_check_branch
          %465 = sbr.rel (%p463) target = $region32
        $region31: #{tpu_custom_call.1} parent=11 // pred_region
          _
        $region32: #{tpu_custom_call.1} parent=11 // pred_fallthru
          _
        // Predicated region
        $region33: #{tpu_custom_call.1} parent=11 // pred_check
          %p466 = pneg %p263
        $region34: #{tpu_custom_call.1} parent=11 // pred_check_branch
          %468 = sbr.rel (%p466) target = $region36
        $region35: #{tpu_custom_call.1} parent=11 // pred_region
          _
        $region36: #{tpu_custom_call.1} parent=11 // pred_fallthru
          _
        // Predicated region
        $region37: #{tpu_custom_call.1} parent=11 // pred_check
          %p469 = pneg %p284
        $region38: #{tpu_custom_call.1} parent=11 // pred_check_branch
          %471 = sbr.rel (%p469) target = $region40
        $region39: #{tpu_custom_call.1} parent=11 // pred_region
          _
        $region40: #{tpu_custom_call.1} parent=11 // pred_fallthru
          _
        // Predicated region
        $region41: #{tpu_custom_call.1} parent=11 // pred_check
          %p472 = pneg %p305
        $region42: #{tpu_custom_call.1} parent=11 // pred_check_branch
          %474 = sbr.rel (%p472) target = $region44
        $region43: #{tpu_custom_call.1} parent=11 // pred_region
          %476 = vsyncadd [#allocation13], 0
          %s477 = sshll.u32 %s11, 4
          %s478 = int_to_ptr.hbm [resolvable:$true] %s477
          %s479 = sshll.u32 [#allocation12], 4
          %s480 = int_to_ptr.vmem [resolvable:$true] %s479
          %485 = dma.hbm_to_vmem [thread:$0]  %s478, 256, %s480, [#allocation13], 64, 64, 4
        $region44: #{tpu_custom_call.1} parent=11 // pred_fallthru
          _
        // Predicated region
        $region45: #{tpu_custom_call.1} parent=11 // pred_check
          %p486 = pneg %p326
        $region46: #{tpu_custom_call.1} parent=11 // pred_check_branch
          %488 = sbr.rel (%p486) target = $region48
        $region47: #{tpu_custom_call.1} parent=11 // pred_region
          _
        $region48: #{tpu_custom_call.1} parent=11 // pred_fallthru
          _
        // Predicated region
        $region49: #{tpu_custom_call.1} parent=11 // pred_check
          %p489 = pneg %p347
        $region50: #{tpu_custom_call.1} parent=11 // pred_check_branch
          %491 = sbr.rel (%p489) target = $region52
        $region51: #{tpu_custom_call.1} parent=11 // pred_region
          _
        $region52: #{tpu_custom_call.1} parent=11 // pred_fallthru
          _
        // Predicated region
        $region53: #{tpu_custom_call.1} parent=11 // pred_check
          %p492 = pneg %p368
        $region54: #{tpu_custom_call.1} parent=11 // pred_check_branch
          %494 = sbr.rel (%p492) target = $region56
        $region55: #{tpu_custom_call.1} parent=11 // pred_region
          _
        $region56: #{tpu_custom_call.1} parent=11 // pred_fallthru
          _
        // Predicated region
        $region57: #{tpu_custom_call.1} parent=11 // pred_check
          %p495 = pneg %p389
        $region58: #{tpu_custom_call.1} parent=11 // pred_check_branch
          %497 = sbr.rel (%p495) target = $region60
        $region59: #{tpu_custom_call.1} parent=11 // pred_region
          _
        $region60: #{tpu_custom_call.1} parent=11 // pred_fallthru
          _
        // Predicated region
        $region61: #{tpu_custom_call.1} parent=11 // pred_check
          %p498 = pneg %p410
        $region62: #{tpu_custom_call.1} parent=11 // pred_check_branch
          %500 = sbr.rel (%p498) target = $region64
        $region63: #{tpu_custom_call.1} parent=11 // pred_region
          _
        $region64: #{tpu_custom_call.1} parent=11 // pred_fallthru
          _
      $region12: #{tpu_custom_call.1} parent=5 // pred_fallthru
        _
      %p501 = scmp.lt.s32.totalorder %s33, 2
      // Predicated region
      $region65: #{tpu_custom_call.1} parent=5 // pred_check
        %p502 = pneg %p501
      $region66: #{tpu_custom_call.1} parent=5 // pred_check_branch
        %504 = sbr.rel (%p502) target = $region68
      $region67: #{tpu_custom_call.1} parent=5 // pred_region
        // Predicated region
        $region69: #{tpu_custom_call.1} parent=67 // pred_check
          %p505 = pneg %p53
        $region70: #{tpu_custom_call.1} parent=67 // pred_check_branch
          %507 = sbr.rel (%p505) target = $region72
        $region71: #{tpu_custom_call.1} parent=67 // pred_region
          %p508 = scmp.lt.s32.totalorder %s33, 1
          %s509 = scalar_select %p508, %s33, 1
          %s510 = smul.addr %s509, 8
          %s511 = scalar_lea.vmem %s0, %s510
        $region72: #{tpu_custom_call.1} parent=67 // pred_fallthru
          _
        // Predicated region
        $region73: #{tpu_custom_call.1} parent=67 // pred_check
          %p512 = pneg %p79
        $region74: #{tpu_custom_call.1} parent=67 // pred_check_branch
          %514 = sbr.rel (%p512) target = $region76
        $region75: #{tpu_custom_call.1} parent=67 // pred_region
          %s515 = sand.u32 %s69, 1
          %s516 = scalar_lea.sflag [#allocation7], %s515
          %s517 = sand.u32 %s69, 1
          %s518 = smul.addr %s517, 4
          %s519 = scalar_lea.vmem [#allocation6], %s518
          %521 = vsyncadd %s516, 0
          %s522 = smul.addr %s33, 4
          %s523 = scalar_lea.hbm %s1, %s522
          %s525 = sshll.u32 %s523, 4
          %s526 = int_to_ptr.hbm [resolvable:$true] %s525
          %s527 = sshll.u32 %s519, 4
          %s528 = int_to_ptr.vmem [resolvable:$true] %s527
          %530 = dma.hbm_to_vmem [thread:$0]  %s526, 64, %s528, %s516
        $region76: #{tpu_custom_call.1} parent=67 // pred_fallthru
          _
        // Predicated region
        $region77: #{tpu_custom_call.1} parent=67 // pred_check
          %p531 = pneg %p105
        $region78: #{tpu_custom_call.1} parent=67 // pred_check_branch
          %533 = sbr.rel (%p531) target = $region80
        $region79: #{tpu_custom_call.1} parent=67 // pred_region
          %s534 = sand.u32 %s33, 1
          %s535 = scalar_lea.sflag [#allocation10], %s534
          %s536 = sand.u32 %s95, 1
          %s537 = smul.addr %s536, 4
          %s538 = scalar_lea.vmem [#allocation9], %s537
          %540 = vsyncadd %s535, 0
          %s541 = smul.addr %s33, 4
          %s542 = scalar_lea.hbm %s2, %s541
          %s544 = sshll.u32 %s542, 4
          %s545 = int_to_ptr.hbm [resolvable:$true] %s544
          %s546 = sshll.u32 %s538, 4
          %s547 = int_to_ptr.vmem [resolvable:$true] %s546
          %549 = dma.hbm_to_vmem [thread:$0]  %s545, 64, %s547, %s535
        $region80: #{tpu_custom_call.1} parent=67 // pred_fallthru
          _
        // Predicated region
        $region81: #{tpu_custom_call.1} parent=67 // pred_check
          %p550 = pneg %p131
        $region82: #{tpu_custom_call.1} parent=67 // pred_check_branch
          %552 = sbr.rel (%p550) target = $region84
        $region83: #{tpu_custom_call.1} parent=67 // pred_region
          %s553 = sand.u32 %s33, 1
          %s554 = scalar_lea.sflag [#allocation10], %s553
          %s555 = sand.u32 %s121, 1
          %s556 = smul.addr %s555, 4
          %s557 = scalar_lea.vmem [#allocation11], %s556
          %559 = vsyncadd %s554, 0
          %s560 = smul.addr %s33, 4
          %s561 = scalar_lea.hbm %s3, %s560
          %s563 = sshll.u32 %s561, 4
          %s564 = int_to_ptr.hbm [resolvable:$true] %s563
          %s565 = sshll.u32 %s557, 4
          %s566 = int_to_ptr.vmem [resolvable:$true] %s565
          %568 = dma.hbm_to_vmem [thread:$0]  %s564, 64, %s566, %s554
        $region84: #{tpu_custom_call.1} parent=67 // pred_fallthru
          _
      $region68: #{tpu_custom_call.1} parent=5 // pred_fallthru
        _
      %p569 = scmp.le.s32.totalorder 1, %s33
      %p570 = scmp.lt.s32.totalorder %s33, 3
      %p571 = pnand %p569, %p570
      %p572 = pneg %p571
      // Predicated region
      $region85: #{tpu_custom_call.1} parent=5 // pred_check
        _
      $region86: #{tpu_custom_call.1} parent=5 // pred_check_branch
        %574 = sbr.rel (%p571) target = $region88
      $region87: #{tpu_custom_call.1} parent=5 // pred_region
        %s575 = ssub.s32 %s33, 1
        %s576 = sand.u32 %s72, 1
        %s577 = scalar_lea.sflag [#allocation7], %s576
        %s578 = sand.u32 %s72, 1
        %s579 = smul.addr %s578, 4
        %s580 = scalar_lea.vmem [#allocation6], %s579
        // Predicated region
        $region89: #{tpu_custom_call.1} parent=87 // pred_check
          %p581 = pneg %p85
        $region90: #{tpu_custom_call.1} parent=87 // pred_check_branch
          %583 = sbr.rel (%p581) target = $region92
        $region91: #{tpu_custom_call.1} parent=87 // pred_region
          %585 = dma.done %s577, 64
        $region92: #{tpu_custom_call.1} parent=87 // pred_fallthru
          _
        %s586 = sand.u32 %s38, 1
        %s587 = scalar_lea.sflag [#allocation10], %s586
        %s588 = sand.u32 %s98, 1
        %s589 = smul.addr %s588, 4
        %s590 = scalar_lea.vmem [#allocation9], %s589
        // Predicated region
        $region93: #{tpu_custom_call.1} parent=87 // pred_check
          %p591 = pneg %p111
        $region94: #{tpu_custom_call.1} parent=87 // pred_check_branch
          %593 = sbr.rel (%p591) target = $region96
        $region95: #{tpu_custom_call.1} parent=87 // pred_region
          %595 = dma.done %s587, 64
        $region96: #{tpu_custom_call.1} parent=87 // pred_fallthru
          _
        %s596 = sand.u32 %s38, 1
        %s597 = scalar_lea.sflag [#allocation10], %s596
        %s598 = sand.u32 %s124, 1
        %s599 = smul.addr %s598, 4
        %s600 = scalar_lea.vmem [#allocation11], %s599
        // Predicated region
        $region97: #{tpu_custom_call.1} parent=87 // pred_check
          %p601 = pneg %p137
        $region98: #{tpu_custom_call.1} parent=87 // pred_check_branch
          %603 = sbr.rel (%p601) target = $region100
        $region99: #{tpu_custom_call.1} parent=87 // pred_region
          %605 = dma.done %s597, 64
        $region100: #{tpu_custom_call.1} parent=87 // pred_fallthru
          _
        // Predicated region
        $region101: #{tpu_custom_call.1} parent=87 // pred_check
          %p606 = pneg %p305
        $region102: #{tpu_custom_call.1} parent=87 // pred_check_branch
          %608 = sbr.rel (%p606) target = $region104
        $region103: #{tpu_custom_call.1} parent=87 // pred_region
          %610 = dma.done [#allocation13], 256
        $region104: #{tpu_custom_call.1} parent=87 // pred_fallthru
          _
        %p611 = scmp.lt.s32.totalorder %s38, 1
        %s612 = scalar_select %p611, %s38, 1
        %s613 = smul.addr %s612, 8
        %s614 = scalar_lea.vmem %s0, %s613
        %p615 = pneg %p59
        %p616 = pneg %p56
        %s617 = sand.u32 %s72, 1
        %s618 = scalar_lea.sflag [#allocation7], %s617
        %s619 = sand.u32 %s72, 1
        %s620 = smul.addr %s619, 4
        %s621 = scalar_lea.vmem [#allocation6], %s620
        %p622 = pneg %p85
        %p623 = pneg %p82
        %s624 = sand.u32 %s38, 1
        %s625 = scalar_lea.sflag [#allocation10], %s624
        %s626 = sand.u32 %s98, 1
        %s627 = smul.addr %s626, 4
        %s628 = scalar_lea.vmem [#allocation9], %s627
        %p629 = pneg %p111
        %p630 = pneg %p108
        %s631 = sand.u32 %s38, 1
        %s632 = scalar_lea.sflag [#allocation10], %s631
        %s633 = sand.u32 %s124, 1
        %s634 = smul.addr %s633, 4
        %s635 = scalar_lea.vmem [#allocation11], %s634
        %p636 = pneg %p137
        %p637 = pneg %p134
        %p638 = pneg %p158
        %p639 = pneg %p155
        %p640 = pneg %p179
        %p641 = pneg %p176
        %p642 = pneg %p200
        %p643 = pneg %p197
        %p644 = pneg %p221
        %p645 = pneg %p218
        %p646 = pneg %p242
        %p647 = pneg %p239
        %p648 = pneg %p263
        %p649 = pneg %p260
        %p650 = pneg %p284
        %p651 = pneg %p281
        %p652 = pneg %p305
        %p653 = pneg %p302
        %p654 = pneg %p326
        %p655 = pneg %p323
        %p656 = pneg %p347
        %p657 = pneg %p344
        %p658 = pneg %p368
        %p659 = pneg %p365
        %p660 = pneg %p389
        %p661 = pneg %p386
        %p662 = pneg %p410
        %p663 = pneg %p407
        %p664 = pneg %p436
        %p665 = pneg %p433
        %s666 = sand.u32 %s423, 1
        %s667 = scalar_lea.sflag [#allocation8], %s666
        %s668 = sand.u32 %s423, 1
        %s669 = smul.addr %s668, 8
        %s670 = scalar_lea.vmem [#allocation14], %s669
        %p671 = scmp.lt.s32.totalorder %s38, 1
        %s672 = scalar_select %p671, %s38, 1
        %s673 = smul.addr %s672, 8
        %s674 = scalar_lea.vmem %s0, %s673
        %v676 = vld [vmem:[%s674] sm:$0xff]
        %v677 = vpack.c.bf16 %v676, %v676
        %v678 = vld [vmem:[%s4] sm:$0xf]
        %v679 = vld [vmem:[%s4 + $0x4] sm:$0xf]
        %v680 = vld [vmem:[%s4 + $0x8] sm:$0xf]
        %v681 = vld [vmem:[%s4 + $0xc] sm:$0xf]
        %v686 = vunpack.c.l.b16 %v678
        %v687 = vunpack.c.l.b16 %v679
        %v688 = vunpack.c.l.b16 %v680
        %v689 = vunpack.c.l.b16 %v681
        %v690 = vpack.c.b16 %v687, %v686
        %v691 = vpack.c.b16 %v689, %v688
        %vm694 = vcmask 261120
        %v696 = vsel %vm694, %v677, 0
        %698 = vmatpush.bf16.msra.mxu0 0
        %699 = vmatpush.bf16.msra.mxu0 0
        %700 = vmatpush.bf16.msra.mxu0 0
        %701 = vmatpush.bf16.msra.mxu0 0
        %702 = vmatpush.bf16.msra.mxu0 0
        %703 = vmatpush.bf16.msra.mxu0 0
        %704 = vmatpush.bf16.msra.mxu0 %v691
        %705 = vmatpush.bf16.msra.mxu0 %v690
        %706 = vmatmul.bf16.gmra.mxu0 %v696
        %v707 = vpop.f32.mrf.mxu0
        %v708 = vadd.f32 0.0, %v707
        %v709 = vpop.f32.mrf.mxu0
        %710 = vdwg.mxu0
        %v711 = vpack.c.bf16 %v708, %v708
        %vm712 = vcmask 257024
        %713 = vst.msk [vmem:[#allocation3] sm:$0xf] %vm712, %v711
        %v714 = vld [vmem:[%s580] sm:$0xf]
        %v715 = vld [vmem:[%s5] sm:$0xf]
        %v716 = vld [vmem:[%s5 + $0x4] sm:$0xf]
        %v717 = vld [vmem:[%s5 + $0x8] sm:$0xf]
        %v718 = vld [vmem:[%s5 + $0xc] sm:$0xf]
        %v723 = vunpack.c.l.b16 %v715
        %v724 = vunpack.c.l.b16 %v716
        %v725 = vunpack.c.l.b16 %v717
        %v726 = vunpack.c.l.b16 %v718
        %v727 = vpack.c.b16 %v724, %v723
        %v728 = vpack.c.b16 %v726, %v725
        %v732 = vsel %vm694, %v714, 0
        %734 = vmatpush.bf16.msra.mxu0 0
        %735 = vmatpush.bf16.msra.mxu0 0
        %736 = vmatpush.bf16.msra.mxu0 0
        %737 = vmatpush.bf16.msra.mxu0 0
        %738 = vmatpush.bf16.msra.mxu0 0
        %739 = vmatpush.bf16.msra.mxu0 0
        %740 = vmatpush.bf16.msra.mxu0 %v728
        %741 = vmatpush.bf16.msra.mxu0 %v727
        %742 = vmatmul.bf16.gmra.mxu0 %v732
        %v743 = vpop.f32.mrf.mxu0
        %v744 = vadd.f32 0.0, %v743
        %v745 = vpop.f32.mrf.mxu0
        %746 = vdwg.mxu0
        %v747 = vpack.c.bf16 %v744, %v744
        %748 = vst.msk [vmem:[#allocation4] sm:$0xf] %vm712, %v747
        %v749 = vld [vmem:[%s590] sm:$0xf]
        %v750 = vld [vmem:[%s6] sm:$0xf]
        %v751 = vld [vmem:[%s6 + $0x4] sm:$0xf]
        %v752 = vld [vmem:[%s6 + $0x8] sm:$0xf]
        %v753 = vld [vmem:[%s6 + $0xc] sm:$0xf]
        %v758 = vunpack.c.l.b16 %v750
        %v759 = vunpack.c.l.b16 %v751
        %v760 = vunpack.c.l.b16 %v752
        %v761 = vunpack.c.l.b16 %v753
        %v762 = vpack.c.b16 %v759, %v758
        %v763 = vpack.c.b16 %v761, %v760
        %v767 = vsel %vm694, %v749, 0
        %769 = vmatpush.bf16.msra.mxu0 0
        %770 = vmatpush.bf16.msra.mxu0 0
        %771 = vmatpush.bf16.msra.mxu0 0
        %772 = vmatpush.bf16.msra.mxu0 0
        %773 = vmatpush.bf16.msra.mxu0 0
        %774 = vmatpush.bf16.msra.mxu0 0
        %775 = vmatpush.bf16.msra.mxu0 %v763
        %776 = vmatpush.bf16.msra.mxu0 %v762
        %777 = vmatmul.bf16.gmra.mxu0 %v767
        %v778 = vpop.f32.mrf.mxu0
        %v779 = vadd.f32 0.0, %v778
        %v780 = vpop.f32.mrf.mxu0
        %781 = vdwg.mxu0
        %v782 = vpack.c.bf16 %v779, %v779
        %783 = vst.msk [vmem:[#allocation5] sm:$0xf] %vm712, %v782
        %v784 = vld [vmem:[%s600] sm:$0xf]
        %v785 = vunpack.c.l.bf16 %v784
        %vm786 = vcmp.eq.f32.partialorder %v785, 0.0
        %v787 = vsel %vm786, -1e+20, 0.0
        %v788 = vld [vmem:[#allocation3] sm:$0xf]
        %v789 = vld [vmem:[#allocation4] sm:$0xf]
        %v790 = vld [vmem:[#allocation5] sm:$0xf]
        %vm791 = vcmask 64512
        %v793 = vsel %vm791, %v788, 0
        %v796 = vsel %vm791, %v789, 0
        %798 = vmatpush.bf16.xpose.msra.mxu0 0
        %799 = vmatpush.bf16.xpose.msra.mxu0 0
        %800 = vmatpush.bf16.xpose.msra.mxu0 0
        %801 = vmatpush.bf16.xpose.msra.mxu0 0
        %802 = vmatpush.bf16.xpose.msra.mxu0 0
        %803 = vmatpush.bf16.xpose.msra.mxu0 0
        %804 = vmatpush.bf16.xpose.msra.mxu0 0
        %805 = vmatpush.bf16.xpose.msra.mxu0 %v796
        %806 = vmatmul.bf16.gmra.mxu0 %v793
        %v807 = vpop.f32.mrf.mxu0
        %v808 = vadd.f32 %v787, %v807
        %v809 = vpop.f32.mrf.mxu0
        %810 = vdwg.mxu0
        %v811 = vsel %vm791, %v808, -inf
        %812 = vmax.xlane.f32.xlu0 %v811
        %v813 = vpop.xlane.xlu0 %812
        %v814 = vsub.f32 %v808, %v813
        %v815 = vmul.f32 %v814, 1.442695
        %v816 = vpow.pop %v815
        %v817 = vsel %vm791, %v816, 0.0
        %818 = vadd.xlane.f32.xlu0 %v817
        %v819 = vpop.xlane.xlu0 %818
        %v820 = vrcp.pop %v819
        %v821 = vmul.f32 %v816, %v820
        %v822 = vpack.c.bf16 %v821, %v821
        %v824 = vsel %vm791, %v822, 0
        %vm826 = vcmask 1043456
        %v828 = vsel %vm826, %v790, 0
        %830 = vmatpush.bf16.msra.mxu0 0
        %831 = vmatpush.bf16.msra.mxu0 0
        %832 = vmatpush.bf16.msra.mxu0 0
        %833 = vmatpush.bf16.msra.mxu0 0
        %834 = vmatpush.bf16.msra.mxu0 0
        %835 = vmatpush.bf16.msra.mxu0 0
        %836 = vmatpush.bf16.msra.mxu0 0
        %837 = vmatpush.bf16.msra.mxu0 %v828
        %838 = vmatmul.bf16.gmra.mxu0 %v824
        %v839 = vpop.f32.mrf.mxu0
        %v840 = vadd.f32 0.0, %v839
        %v841 = vpop.f32.mrf.mxu0
        %842 = vdwg.mxu0
        %v843 = vpack.c.bf16 %v840, %v840
        %vm844 = vcmask 60416
        %845 = vst.msk [vmem:[#allocation2] sm:$0xf] %vm844, %v843
        %v846 = vld [vmem:[#allocation3] sm:$0xf]
        %v847 = vld [vmem:[#allocation4] sm:$0xf]
        %v848 = vld [vmem:[#allocation5] sm:$0xf]
        %v850 = vunpack.c.l.b16 %v846
        %v851 = vpack.c.b16 %v850, %v850
        %852 = vrot.lane.b32.xlu0 %v851, 120
        %v853 = vpop.permute.xlu0 %852
        %v855 = vunpack.c.l.b16 %v847
        %v856 = vpack.c.b16 %v855, %v855
        %857 = vrot.lane.b32.xlu0 %v856, 120
        %v858 = vpop.permute.xlu0 %857
        %v860 = vsel %vm791, %v853, 0
        %v863 = vsel %vm791, %v858, 0
        %865 = vmatpush.bf16.xpose.msra.mxu0 0
        %866 = vmatpush.bf16.xpose.msra.mxu0 0
        %867 = vmatpush.bf16.xpose.msra.mxu0 0
        %868 = vmatpush.bf16.xpose.msra.mxu0 0
        %869 = vmatpush.bf16.xpose.msra.mxu0 0
        %870 = vmatpush.bf16.xpose.msra.mxu0 0
        %871 = vmatpush.bf16.xpose.msra.mxu0 0
        %872 = vmatpush.bf16.xpose.msra.mxu0 %v863
        %873 = vmatmul.bf16.gmra.mxu0 %v860
        %v874 = vpop.f32.mrf.mxu0
        %v875 = vadd.f32 %v787, %v874
        %v876 = vpop.f32.mrf.mxu0
        %877 = vdwg.mxu0
        %v878 = vsel %vm791, %v875, -inf
        %879 = vmax.xlane.f32.xlu0 %v878
        %v880 = vpop.xlane.xlu0 %879
        %v881 = vsub.f32 %v875, %v880
        %v882 = vmul.f32 %v881, 1.442695
        %v883 = vpow.pop %v882
        %v884 = vsel %vm791, %v883, 0.0
        %885 = vadd.xlane.f32.xlu0 %v884
        %v886 = vpop.xlane.xlu0 %885
        %v887 = vrcp.pop %v886
        %v888 = vmul.f32 %v883, %v887
        %v889 = vpack.c.bf16 %v888, %v888
        %v891 = vunpack.c.l.b16 %v848
        %v892 = vpack.c.b16 %v891, %v891
        %893 = vrot.lane.b32.xlu0 %v892, 120
        %v894 = vpop.permute.xlu0 %893
        %v896 = vsel %vm791, %v889, 0
        %v899 = vsel %vm826, %v894, 0
        %901 = vmatpush.bf16.msra.mxu0 0
        %902 = vmatpush.bf16.msra.mxu0 0
        %903 = vmatpush.bf16.msra.mxu0 0
        %904 = vmatpush.bf16.msra.mxu0 0
        %905 = vmatpush.bf16.msra.mxu0 0
        %906 = vmatpush.bf16.msra.mxu0 0
        %907 = vmatpush.bf16.msra.mxu0 0
        %908 = vmatpush.bf16.msra.mxu0 %v899
        %909 = vmatmul.bf16.gmra.mxu0 %v896
        %v910 = vpop.f32.mrf.mxu0
        %v911 = vadd.f32 0.0, %v910
        %v912 = vpop.f32.mrf.mxu0
        %913 = vdwg.mxu0
        %v914 = vpack.c.bf16 %v911, %v911
        %916 = vrot.lane.b32.xlu0 %v914, 8
        %v917 = vpop.permute.xlu0 %916
        %vm919 = vcmask 126016
        %920 = vst.msk [vmem:[#allocation2] sm:$0xf] %vm919, %v917
        %v921 = vld [vmem:[#allocation3] sm:$0xf]
        %v922 = vld [vmem:[#allocation4] sm:$0xf]
        %v923 = vld [vmem:[#allocation5] sm:$0xf]
        %v925 = vunpack.c.l.b16 %v921
        %v926 = vpack.c.b16 %v925, %v925
        %927 = vrot.lane.b32.xlu0 %v926, 112
        %v928 = vpop.permute.xlu0 %927
        %v930 = vunpack.c.l.b16 %v922
        %v931 = vpack.c.b16 %v930, %v930
        %932 = vrot.lane.b32.xlu0 %v931, 112
        %v933 = vpop.permute.xlu0 %932
        %v935 = vsel %vm791, %v928, 0
        %v938 = vsel %vm791, %v933, 0
        %940 = vmatpush.bf16.xpose.msra.mxu0 0
        %941 = vmatpush.bf16.xpose.msra.mxu0 0
        %942 = vmatpush.bf16.xpose.msra.mxu0 0
        %943 = vmatpush.bf16.xpose.msra.mxu0 0
        %944 = vmatpush.bf16.xpose.msra.mxu0 0
        %945 = vmatpush.bf16.xpose.msra.mxu0 0
        %946 = vmatpush.bf16.xpose.msra.mxu0 0
        %947 = vmatpush.bf16.xpose.msra.mxu0 %v938
        %948 = vmatmul.bf16.gmra.mxu0 %v935
        %v949 = vpop.f32.mrf.mxu0
        %v950 = vadd.f32 %v787, %v949
        %v951 = vpop.f32.mrf.mxu0
        %952 = vdwg.mxu0
        %v953 = vsel %vm791, %v950, -inf
        %954 = vmax.xlane.f32.xlu0 %v953
        %v955 = vpop.xlane.xlu0 %954
        %v956 = vsub.f32 %v950, %v955
        %v957 = vmul.f32 %v956, 1.442695
        %v958 = vpow.pop %v957
        %v959 = vsel %vm791, %v958, 0.0
        %960 = vadd.xlane.f32.xlu0 %v959
        %v961 = vpop.xlane.xlu0 %960
        %v962 = vrcp.pop %v961
        %v963 = vmul.f32 %v958, %v962
        %v964 = vpack.c.bf16 %v963, %v963
        %v966 = vunpack.c.l.b16 %v923
        %v967 = vpack.c.b16 %v966, %v966
        %968 = vrot.lane.b32.xlu0 %v967, 112
        %v969 = vpop.permute.xlu0 %968
        %v971 = vsel %vm791, %v964, 0
        %v974 = vsel %vm826, %v969, 0
        %976 = vmatpush.bf16.msra.mxu0 0
        %977 = vmatpush.bf16.msra.mxu0 0
        %978 = vmatpush.bf16.msra.mxu0 0
        %979 = vmatpush.bf16.msra.mxu0 0
        %980 = vmatpush.bf16.msra.mxu0 0
        %981 = vmatpush.bf16.msra.mxu0 0
        %982 = vmatpush.bf16.msra.mxu0 0
        %983 = vmatpush.bf16.msra.mxu0 %v974
        %984 = vmatmul.bf16.gmra.mxu0 %v971
        %v985 = vpop.f32.mrf.mxu0
        %v986 = vadd.f32 0.0, %v985
        %v987 = vpop.f32.mrf.mxu0
        %988 = vdwg.mxu0
        %v989 = vpack.c.bf16 %v986, %v986
        %991 = vrot.lane.b32.xlu0 %v989, 16
        %v992 = vpop.permute.xlu0 %991
        %vm994 = vcmask 191616
        %995 = vst.msk [vmem:[#allocation2] sm:$0xf] %vm994, %v992
        %v996 = vld [vmem:[#allocation3] sm:$0xf]
        %v997 = vld [vmem:[#allocation4] sm:$0xf]
        %v998 = vld [vmem:[#allocation5] sm:$0xf]
        %v1000 = vunpack.c.l.b16 %v996
        %v1001 = vpack.c.b16 %v1000, %v1000
        %1002 = vrot.lane.b32.xlu0 %v1001, 104
        %v1003 = vpop.permute.xlu0 %1002
        %v1005 = vunpack.c.l.b16 %v997
        %v1006 = vpack.c.b16 %v1005, %v1005
        %1007 = vrot.lane.b32.xlu0 %v1006, 104
        %v1008 = vpop.permute.xlu0 %1007
        %v1010 = vsel %vm791, %v1003, 0
        %v1013 = vsel %vm791, %v1008, 0
        %1015 = vmatpush.bf16.xpose.msra.mxu0 0
        %1016 = vmatpush.bf16.xpose.msra.mxu0 0
        %1017 = vmatpush.bf16.xpose.msra.mxu0 0
        %1018 = vmatpush.bf16.xpose.msra.mxu0 0
        %1019 = vmatpush.bf16.xpose.msra.mxu0 0
        %1020 = vmatpush.bf16.xpose.msra.mxu0 0
        %1021 = vmatpush.bf16.xpose.msra.mxu0 0
        %1022 = vmatpush.bf16.xpose.msra.mxu0 %v1013
        %1023 = vmatmul.bf16.gmra.mxu0 %v1010
        %v1024 = vpop.f32.mrf.mxu0
        %v1025 = vadd.f32 %v787, %v1024
        %v1026 = vpop.f32.mrf.mxu0
        %1027 = vdwg.mxu0
        %v1028 = vsel %vm791, %v1025, -inf
        %1029 = vmax.xlane.f32.xlu0 %v1028
        %v1030 = vpop.xlane.xlu0 %1029
        %v1031 = vsub.f32 %v1025, %v1030
        %v1032 = vmul.f32 %v1031, 1.442695
        %v1033 = vpow.pop %v1032
        %v1034 = vsel %vm791, %v1033, 0.0
        %1035 = vadd.xlane.f32.xlu0 %v1034
        %v1036 = vpop.xlane.xlu0 %1035
        %v1037 = vrcp.pop %v1036
        %v1038 = vmul.f32 %v1033, %v1037
        %v1039 = vpack.c.bf16 %v1038, %v1038
        %v1041 = vunpack.c.l.b16 %v998
        %v1042 = vpack.c.b16 %v1041, %v1041
        %1043 = vrot.lane.b32.xlu0 %v1042, 104
        %v1044 = vpop.permute.xlu0 %1043
        %v1046 = vsel %vm791, %v1039, 0
        %v1049 = vsel %vm826, %v1044, 0
        %1051 = vmatpush.bf16.msra.mxu0 0
        %1052 = vmatpush.bf16.msra.mxu0 0
        %1053 = vmatpush.bf16.msra.mxu0 0
        %1054 = vmatpush.bf16.msra.mxu0 0
        %1055 = vmatpush.bf16.msra.mxu0 0
        %1056 = vmatpush.bf16.msra.mxu0 0
        %1057 = vmatpush.bf16.msra.mxu0 0
        %1058 = vmatpush.bf16.msra.mxu0 %v1049
        %1059 = vmatmul.bf16.gmra.mxu0 %v1046
        %v1060 = vpop.f32.mrf.mxu0
        %v1061 = vadd.f32 0.0, %v1060
        %v1062 = vpop.f32.mrf.mxu0
        %1063 = vdwg.mxu0
        %v1064 = vpack.c.bf16 %v1061, %v1061
        %1066 = vrot.lane.b32.xlu0 %v1064, 24
        %v1067 = vpop.permute.xlu0 %1066
        %vm1069 = vcmask 257216
        %1070 = vst.msk [vmem:[#allocation2] sm:$0xf] %vm1069, %v1067
        %v1071 = vld [vmem:[#allocation2] sm:$0xf]
        %v1072 = vld [vmem:[%s7] sm:$0xf]
        %v1073 = vld [vmem:[%s7 + $0x4] sm:$0xf]
        %v1074 = vld [vmem:[%s7 + $0x8] sm:$0xf]
        %v1075 = vld [vmem:[%s7 + $0xc] sm:$0xf]
        %v1076 = vld [vmem:[%s8] sm:$0x1]
        %v1078 = vperm.slane %v1076, 0
        %v1084 = vunpack.c.l.b16 %v1072
        %v1085 = vunpack.c.l.b16 %v1073
        %v1086 = vunpack.c.l.b16 %v1074
        %v1087 = vunpack.c.l.b16 %v1075
        %v1088 = vpack.c.b16 %v1085, %v1084
        %v1089 = vpack.c.b16 %v1087, %v1086
        %v1093 = vsel %vm694, %v1071, 0
        %1095 = vmatpush.bf16.msra.mxu0 0
        %1096 = vmatpush.bf16.msra.mxu0 0
        %1097 = vmatpush.bf16.msra.mxu0 0
        %1098 = vmatpush.bf16.msra.mxu0 0
        %1099 = vmatpush.bf16.msra.mxu0 0
        %1100 = vmatpush.bf16.msra.mxu0 0
        %1101 = vmatpush.bf16.msra.mxu0 %v1089
        %1102 = vmatpush.bf16.msra.mxu0 %v1088
        %1103 = vmatmul.bf16.gmra.mxu0 %v1093
        %v1104 = vpop.f32.mrf.mxu0
        %v1105 = vadd.f32 %v1078, %v1104
        %v1106 = vpop.f32.mrf.mxu0
        %1107 = vdwg.mxu0
        %v1108 = vadd.f32 %v1105, %v676
        %v1109 = vld [vmem:[%s9] sm:$0x1]
        %v1110 = vld [vmem:[%s10] sm:$0x1]
        %v1111 = vsel %vm694, %v1108, 0.0
        %1112 = vadd.xlane.f32.xlu0 %v1111
        %v1113 = vpop.xlane.xlu0 %1112
        %v1114 = vrcp.pop 32.0
        %v1115 = vmul.f32 32.0, %v1114
        %v1116 = vsub.f32 1.0, %v1115
        %v1117 = vmul.f32 %v1114, %v1116
        %v1118 = vadd.f32 %v1114, %v1117
        %vm1119 = vweird.f32 %v1114
        %v1120 = vsel %vm1119, %v1114, %v1118
        %v1121 = vmul.f32 %v1113, %v1120
        %v1122 = vsub.f32 %v1108, %v1121
        %v1123 = vmul.f32 %v1122, %v1122
        %v1124 = vsel %vm694, %v1123, 0.0
        %1125 = vadd.xlane.f32.xlu0 %v1124
        %v1126 = vpop.xlane.xlu0 %1125
        %v1127 = vmul.f32 %v1126, %v1120
        %v1128 = vadd.f32 %v1127, 1e-05
        %v1129 = vrsqrt.pop %v1128
        %v1130 = vmul.f32 %v1129, %v1128
        %v1131 = vmul.f32 %v1130, %v1129
        %v1132 = vmul.f32 0.5, %v1131
        %v1133 = vsub.f32 1.5, %v1132
        %v1134 = vmul.f32 %v1129, %v1133
        %vm1135 = vweird.f32 %v1128
        %vm1136 = vweird.f32 %v1129
        %vm1137 = vmor %vm1135, %vm1136
        %v1138 = vsel %vm1137, %v1129, %v1134
        %v1139 = vmul.f32 %v1122, %v1138
        %v1141 = vperm.slane %v1109, 0
        %v1143 = vmul.f32 %v1139, %v1141
        %v1145 = vperm.slane %v1110, 0
        %v1147 = vadd.f32 %v1143, %v1145
        %v1148 = vpack.c.bf16 %v1147, %v1147
        %v1149 = vld [vmem:[#allocation12] sm:$0xf]
        %v1150 = vld [vmem:[#allocation12 + $0x4] sm:$0xf]
        %v1151 = vld [vmem:[#allocation12 + $0x8] sm:$0xf]
        %v1152 = vld [vmem:[#allocation12 + $0xc] sm:$0xf]
        %v1153 = vld [vmem:[%s12] sm:$0x1]
        %v1155 = vperm.slane %v1153, 0
        %v1161 = vunpack.c.l.b16 %v1149
        %v1162 = vunpack.c.l.b16 %v1150
        %v1163 = vunpack.c.l.b16 %v1151
        %v1164 = vunpack.c.l.b16 %v1152
        %v1165 = vpack.c.b16 %v1162, %v1161
        %v1166 = vpack.c.b16 %v1164, %v1163
        %v1170 = vsel %vm694, %v1148, 0
        %1172 = vmatpush.bf16.msra.mxu0 0
        %1173 = vmatpush.bf16.msra.mxu0 0
        %1174 = vmatpush.bf16.msra.mxu0 0
        %1175 = vmatpush.bf16.msra.mxu0 0
        %1176 = vmatpush.bf16.msra.mxu0 0
        %1177 = vmatpush.bf16.msra.mxu0 0
        %1178 = vmatpush.bf16.msra.mxu0 %v1166
        %1179 = vmatpush.bf16.msra.mxu0 %v1165
        %1180 = vmatmul.bf16.gmra.mxu0 %v1170
        %v1181 = vpop.f32.mrf.mxu0
        %v1182 = vadd.f32 %v1155, %v1181
        %v1183 = vpop.f32.mrf.mxu0
        %1184 = vdwg.mxu0
        %v1185 = vmax.f32 %v1182, 0.0
        %v1186 = vpack.c.bf16 %v1185, %v1185
        %v1187 = vld [vmem:[%s13] sm:$0xf]
        %v1188 = vld [vmem:[%s13 + $0x4] sm:$0xf]
        %v1189 = vld [vmem:[%s13 + $0x8] sm:$0xf]
        %v1190 = vld [vmem:[%s13 + $0xc] sm:$0xf]
        %v1191 = vld [vmem:[%s13 + $0x10] sm:$0xf]
        %v1192 = vld [vmem:[%s13 + $0x14] sm:$0xf]
        %v1193 = vld [vmem:[%s13 + $0x18] sm:$0xf]
        %v1194 = vld [vmem:[%s13 + $0x1c] sm:$0xf]
        %v1195 = vld [vmem:[%s13 + $0x20] sm:$0xf]
        %v1196 = vld [vmem:[%s13 + $0x24] sm:$0xf]
        %v1197 = vld [vmem:[%s13 + $0x28] sm:$0xf]
        %v1198 = vld [vmem:[%s13 + $0x2c] sm:$0xf]
        %v1199 = vld [vmem:[%s13 + $0x30] sm:$0xf]
        %v1200 = vld [vmem:[%s13 + $0x34] sm:$0xf]
        %v1201 = vld [vmem:[%s13 + $0x38] sm:$0xf]
        %v1202 = vld [vmem:[%s13 + $0x3c] sm:$0xf]
        %v1203 = vld [vmem:[%s14] sm:$0x1]
        %v1205 = vperm.slane %v1203, 0
        %v1223 = vunpack.c.l.b16 %v1187
        %v1224 = vunpack.c.l.b16 %v1188
        %v1225 = vunpack.c.l.b16 %v1189
        %v1226 = vunpack.c.l.b16 %v1190
        %v1227 = vunpack.c.l.b16 %v1191
        %v1228 = vunpack.c.l.b16 %v1192
        %v1229 = vunpack.c.l.b16 %v1193
        %v1230 = vunpack.c.l.b16 %v1194
        %v1231 = vunpack.c.l.b16 %v1195
        %v1232 = vunpack.c.l.b16 %v1196
        %v1233 = vunpack.c.l.b16 %v1197
        %v1234 = vunpack.c.l.b16 %v1198
        %v1235 = vunpack.c.l.b16 %v1199
        %v1236 = vunpack.c.l.b16 %v1200
        %v1237 = vunpack.c.l.b16 %v1201
        %v1238 = vunpack.c.l.b16 %v1202
        %v1239 = vpack.c.b16 %v1224, %v1223
        %v1240 = vpack.c.b16 %v1226, %v1225
        %v1241 = vpack.c.b16 %v1228, %v1227
        %v1242 = vpack.c.b16 %v1230, %v1229
        %v1243 = vpack.c.b16 %v1232, %v1231
        %v1244 = vpack.c.b16 %v1234, %v1233
        %v1245 = vpack.c.b16 %v1236, %v1235
        %v1246 = vpack.c.b16 %v1238, %v1237
        %1255 = vmatpush.bf16.msra.mxu0 %v1246
        %1256 = vmatpush.bf16.msra.mxu0 %v1245
        %1257 = vmatpush.bf16.msra.mxu0 %v1244
        %1258 = vmatpush.bf16.msra.mxu0 %v1243
        %1259 = vmatpush.bf16.msra.mxu0 %v1242
        %1260 = vmatpush.bf16.msra.mxu0 %v1241
        %1261 = vmatpush.bf16.msra.mxu0 %v1240
        %1262 = vmatpush.bf16.msra.mxu0 %v1239
        %1263 = vmatmul.bf16.gmra.mxu0 %v1186
        %v1264 = vpop.f32.mrf.mxu0
        %v1265 = vadd.f32 %v1205, %v1264
        %v1266 = vpop.f32.mrf.mxu0
        %1267 = vdwg.mxu0
        %v1268 = vadd.f32 %v1265, %v1147
        %v1269 = vld [vmem:[%s15] sm:$0x1]
        %v1270 = vld [vmem:[%s16] sm:$0x1]
        %v1271 = vsel %vm694, %v1268, 0.0
        %1272 = vadd.xlane.f32.xlu0 %v1271
        %v1273 = vpop.xlane.xlu0 %1272
        %v1274 = vmul.f32 %v1273, %v1120
        %v1275 = vsub.f32 %v1268, %v1274
        %v1276 = vmul.f32 %v1275, %v1275
        %v1277 = vsel %vm694, %v1276, 0.0
        %1278 = vadd.xlane.f32.xlu0 %v1277
        %v1279 = vpop.xlane.xlu0 %1278
        %v1280 = vmul.f32 %v1279, %v1120
        %v1281 = vadd.f32 %v1280, 1e-05
        %v1282 = vrsqrt.pop %v1281
        %v1283 = vmul.f32 %v1282, %v1281
        %v1284 = vmul.f32 %v1283, %v1282
        %v1285 = vmul.f32 0.5, %v1284
        %v1286 = vsub.f32 1.5, %v1285
        %v1287 = vmul.f32 %v1282, %v1286
        %vm1288 = vweird.f32 %v1281
        %vm1289 = vweird.f32 %v1282
        %vm1290 = vmor %vm1288, %vm1289
        %v1291 = vsel %vm1290, %v1282, %v1287
        %v1292 = vmul.f32 %v1275, %v1291
        %v1294 = vperm.slane %v1269, 0
        %v1296 = vmul.f32 %v1292, %v1294
        %v1298 = vperm.slane %v1270, 0
        %v1300 = vadd.f32 %v1296, %v1298
        %1301 = vst.msk [vmem:[%s670] sm:$0xff] %vm694, %v1300
        %s1302 = sand.u32 %s423, 1
        %s1303 = scalar_lea.sflag [#allocation8], %s1302
        %s1304 = sand.u32 %s423, 1
        %s1305 = smul.addr %s1304, 8
        %s1306 = scalar_lea.vmem [#allocation14], %s1305
        // Predicated region
        $region105: #{tpu_custom_call.1} parent=87 // pred_check
          %p1307 = pneg %p433
        $region106: #{tpu_custom_call.1} parent=87 // pred_check_branch
          %1309 = sbr.rel (%p1307) target = $region108
        $region107: #{tpu_custom_call.1} parent=87 // pred_region
          %1311 = vsyncadd %s1303, 0
          %s1312 = smul.addr %s38, 8
          %s1313 = scalar_lea.hbm %s17, %s1312
          %s1315 = sshll.u32 %s1306, 4
          %s1316 = int_to_ptr.vmem [resolvable:$true] %s1315
          %s1317 = sshll.u32 %s1313, 4
          %s1318 = int_to_ptr.hbm [resolvable:$true] %s1317
          %1320 = dma.vmem_to_hbm [thread:$0]  %s1316, 128, %s1318, %s1303
        $region108: #{tpu_custom_call.1} parent=87 // pred_fallthru
          _
      $region88: #{tpu_custom_call.1} parent=5 // pred_fallthru
        _
      %p1321 = scmp.le.s32.totalorder 2, %s33
      // Predicated region
      $region109: #{tpu_custom_call.1} parent=5 // pred_check
        %p1322 = pneg %p1321
      $region110: #{tpu_custom_call.1} parent=5 // pred_check_branch
        %1324 = sbr.rel (%p1322) target = $region112
      $region111: #{tpu_custom_call.1} parent=5 // pred_region
        %s1325 = ssub.s32 %s33, 2
        // Predicated region
        $region113: #{tpu_custom_call.1} parent=111 // pred_check
          %p1326 = pneg %p439
        $region114: #{tpu_custom_call.1} parent=111 // pred_check_branch
          %1328 = sbr.rel (%p1326) target = $region116
        $region115: #{tpu_custom_call.1} parent=111 // pred_region
          %s1329 = sand.u32 %s424, 1
          %s1330 = scalar_lea.sflag [#allocation8], %s1329
          %s1331 = sand.u32 %s424, 1
          %s1332 = smul.addr %s1331, 8
          %s1333 = scalar_lea.vmem [#allocation14], %s1332
          %1335 = dma.done %s1330, 128
        $region116: #{tpu_custom_call.1} parent=111 // pred_fallthru
          _
      $region112: #{tpu_custom_call.1} parent=5 // pred_fallthru
        _
    $region6: #{tpu_custom_call.1} parent=1 // loop_footer
      %s37 = sadd.s32 1, %s33
    $region7: #{tpu_custom_call.1} parent=1 // loop_footer_branch
      %32 = sbr.rel target = $region3
    $region8: #{tpu_custom_call.1} parent=1 // loop_exit
      _
    %1336 = vsyncpa [#allocation7], 1
    %s1337 = scalar_lea.sflag [#allocation7], 1
    %1338 = vsyncpa %s1337, 1
    %1339 = vsyncpa [#allocation10], 1
    %s1340 = scalar_lea.sflag [#allocation10], 1
    %1341 = vsyncpa %s1340, 1
    %1342 = vsyncpa [#allocation13], 1
    %1343 = vsyncpa [#allocation8], 1
    %s1344 = scalar_lea.sflag [#allocation8], 1
    %1345 = vsyncpa %s1344, 1

</llo_original>
